<compile_context>
chip_gen: v7x
topology: tpu7x:2x2x1
jax: 0.10.0
libtpu: 0.0.40
codegen_flags: <defaults>
</compile_context>

<pallas_src>
import functools

import jax
import jax.numpy as jnp
from jax import lax
from jax.experimental import pallas as pl
from jax.experimental.pallas import tpu as pltpu

_MASK_VALUE = -1e30  # finite "minus infinity": no NaNs even if a row is fully masked


def _mha_flash_kernel(xq_ref, xkv_ref, wq_ref, wkv_ref, wp_ref, bp_ref, o_ref,
                      q_scr, m_scr, l_scr, acc_scr, *, num_heads, head_size):
    """grid = (batch, q_tile, kv_tile); kv_tile is the innermost (reduction) axis."""
    H, hs = num_heads, head_size
    Dh = H * hs
    tq = xq_ref.shape[1]
    tkv = xkv_ref.shape[1]
    i = pl.program_id(1)            # q-tile index
    j = pl.program_id(2)            # kv-tile index
    nj = pl.num_programs(2)
    in_dtype = xq_ref.dtype
    scale = float(head_size) ** -0.5

    # ---- once per (batch, q-tile): project Q for all heads with ONE wide matmul and
    #      reset the online-softmax state ----
    @pl.when(j == 0)
    def _init():
        q = jnp.dot(xq_ref[0], wq_ref[...], preferred_element_type=jnp.float32)
        q_scr[...] = q.astype(q_scr.dtype)                  # (tq, H*hs)
        m_scr[...] = jnp.full_like(m_scr, _MASK_VALUE)      # (tq, H)
        l_scr[...] = jnp.zeros_like(l_scr)                  # (tq, H)
        acc_scr[...] = jnp.zeros_like(acc_scr)              # (tq, H*hs)

    # ---- causal block skip: kv blocks strictly above the diagonal contribute nothing ----
    q_last = i * tq + (tq - 1)
    k_first = j * tkv

    @pl.when(k_first <= q_last)
    def _update():
        # K and V for all heads in one (C, 2*H*hs) matmul; keep MXU operands in input dtype.
        kv = jnp.dot(xkv_ref[0], wkv_ref[...], preferred_element_type=jnp.float32)
        kv = kv.astype(in_dtype)
        k_all = kv[:, :Dh]                                  # (tkv, H*hs)
        v_all = kv[:, Dh:]                                  # (tkv, H*hs)

        rows = i * tq + lax.broadcasted_iota(jnp.int32, (tq, tkv), 0)
        cols = j * tkv + lax.broadcasted_iota(jnp.int32, (tq, tkv), 1)
        causal = cols <= rows

        # Per-head online softmax; each head writes straight into its lane slice of the
        # shared accumulator (no concatenate, no rank-3 relayouts).
        for h in range(H):
            sl = slice(h * hs, (h + 1) * hs)
            q_h = q_scr[:, sl]                              # (tq, hs)
            k_h = k_all[:, sl]                              # (tkv, hs)
            v_h = v_all[:, sl]                              # (tkv, hs)

            s = jnp.dot(q_h, k_h.T, preferred_element_type=jnp.float32) * scale
            s = jnp.where(causal, s, _MASK_VALUE)           # (tq, tkv)

            m_prev = m_scr[:, h:h + 1]                      # (tq, 1)
            m_new = jnp.maximum(m_prev, jnp.max(s, axis=-1, keepdims=True))
            alpha = jnp.exp(m_prev - m_new)
            p = jnp.exp(s - m_new)                          # (tq, tkv) f32

            l_scr[:, h:h + 1] = alpha * l_scr[:, h:h + 1] + jnp.sum(p, axis=-1, keepdims=True)
            acc_scr[:, sl] = alpha * acc_scr[:, sl] + jnp.dot(
                p.astype(in_dtype), v_h, preferred_element_type=jnp.float32)
            m_scr[:, h:h + 1] = m_new

    # ---- last kv tile: normalize, output-project, store ----
    @pl.when(j == nj - 1)
    def _finalize():
        inv_l = pl.reciprocal(l_scr[...], approx=True)      # (tq, H), EUP slot
        for h in range(H):
            sl = slice(h * hs, (h + 1) * hs)
            acc_scr[:, sl] = acc_scr[:, sl] * inv_l[:, h:h + 1]
        cat = acc_scr[...].astype(in_dtype)                 # (tq, H*hs)
        out = jnp.dot(cat, wp_ref[...], preferred_element_type=jnp.float32) + bp_ref[...]
        # TODO(synk): attention/projection dropout omitted (eval-mode / p=0 semantics).
        o_ref[0] = out.astype(o_ref.dtype)


def _stack_heads(w):
    """(H, C, hs) -> (C, H*hs) so columns [h*hs:(h+1)*hs] belong to head h."""
    H, C, hs = w.shape
    return jnp.transpose(w, (1, 0, 2)).reshape(C, H * hs)


def _pick_tile(T, cap=128):
    """Largest multiple-of-8 divisor of T that is <= cap, or T itself when T <= cap."""
    if T <= cap:
        return T
    t = cap
    while t >= 8:
        if T % t == 0:
            return t
        t -= 8
    return T


def multi_head_attention(x, wq, wk, wv, wp, bp, *, num_heads, head_size):
    """x: (B,T,C); wq/wk/wv: (H,C,hs); wp: (H*hs,C); bp: (C,). Returns (B,T,C)."""
    B, T, C = x.shape
    Dh = num_heads * head_size

    # Pre-stack per-head projection weights into MXU-wide slabs (in a real model these
    # would be stored pre-stacked once).
    w_q = _stack_heads(wq)                                              # (C, H*hs)
    w_kv = jnp.concatenate([_stack_heads(wk), _stack_heads(wv)], axis=1)  # (C, 2*H*hs)
    bp2 = bp.reshape(1, C)

    tq = _pick_tile(T)
    tkv = _pick_tile(T)
    assert T % tq == 0 and T % tkv == 0

    kernel = functools.partial(_mha_flash_kernel,
                               num_heads=num_heads, head_size=head_size)

    return pl.pallas_call(
        kernel,
        out_shape=jax.ShapeDtypeStruct((B, T, C), x.dtype),
        grid_spec=pltpu.PrefetchScalarGridSpec(
            num_scalar_prefetch=0,
            grid=(B, T // tq, T // tkv),
            in_specs=[
                pl.BlockSpec((1, tq, C), lambda b, i, j: (b, i, 0)),    # x (queries)
                pl.BlockSpec((1, tkv, C), lambda b, i, j: (b, j, 0)),   # x (keys/values)
                # Grid-invariant weights: constant index_map -> fetched once, not re-DMA'd.
                pl.BlockSpec((C, Dh), lambda b, i, j: (0, 0)),          # W_q   (all heads)
                pl.BlockSpec((C, 2 * Dh), lambda b, i, j: (0, 0)),      # W_k|W_v (all heads)
                pl.BlockSpec((Dh, C), lambda b, i, j: (0, 0)),          # W_proj
                pl.BlockSpec((1, C), lambda b, i, j: (0, 0)),           # b_proj
            ],
            out_specs=pl.BlockSpec((1, tq, C), lambda b, i, j: (b, i, 0)),
            scratch_shapes=[
                pltpu.VMEM((tq, Dh), x.dtype),              # Q for all heads
                pltpu.VMEM((tq, num_heads), jnp.float32),   # running max m (per head)
                pltpu.VMEM((tq, num_heads), jnp.float32),   # running sum l (per head)
                pltpu.VMEM((tq, Dh), jnp.float32),          # un-normalized output acc
            ],
        ),
        compiler_params=pltpu.CompilerParams(
            dimension_semantics=("parallel", "parallel", "arbitrary"),
            vmem_limit_bytes=64 * 1024 * 1024,
        ),
    )(x, x, w_q, w_kv, wp, bp2)


def _reference(x, wq, wk, wv, wp, bp, num_heads, head_size):
    """Plain-JAX reference matching the PyTorch forward (eval mode)."""
    B, T, C = x.shape
    xf = x.astype(jnp.float32)
    row = jnp.arange(T)[:, None]
    col = jnp.arange(T)[None, :]
    causal = col <= row
    outs = []
    for h in range(num_heads):
        q = xf @ wq[h]
        k = xf @ wk[h]
        v = xf @ wv[h]
        wei = (q @ jnp.swapaxes(k, -2, -1)) * (head_size ** -0.5)
        wei = jnp.where(causal, wei, -jnp.inf)
        wei = jax.nn.softmax(wei, axis=-1)
        outs.append(wei @ v)
    cat = jnp.concatenate(outs, axis=-1)
    return cat @ wp + bp


if __name__ == "__main__":
    # Small shapes consistent with the module.
    batch = 2
    block_size = 8        # T (sequence length == block_size so full tril applies)
    n_embd = 32           # C
    num_heads = 4
    head_size = 8         # num_heads * head_size == n_embd

    key = jax.random.PRNGKey(0)
    kx, kq, kk, kv, kp, kb = jax.random.split(key, 6)

    x = jax.random.normal(kx, (batch, block_size, n_embd), dtype=jnp.float32)

    w_scale = 0.02
    wq = w_scale * jax.random.normal(kq, (num_heads, n_embd, head_size), dtype=jnp.float32)
    wk = w_scale * jax.random.normal(kk, (num_heads, n_embd, head_size), dtype=jnp.float32)
    wv = w_scale * jax.random.normal(kv, (num_heads, n_embd, head_size), dtype=jnp.float32)
    wp = w_scale * jax.random.normal(kp, (num_heads * head_size, n_embd), dtype=jnp.float32)
    bp = w_scale * jax.random.normal(kb, (n_embd,), dtype=jnp.float32)

    out = multi_head_attention(x, wq, wk, wv, wp, bp,
                               num_heads=num_heads, head_size=head_size)
    out = jax.block_until_ready(out)

    ref = _reference(x, wq, wk, wv, wp, bp, num_heads, head_size)
    assert out.shape == (batch, block_size, n_embd)
    err = float(jnp.max(jnp.abs(out - ref)))
    assert err < 1e-3, f"mismatch vs reference: max abs err {err}"

    print("KERNEL_OK")
</pallas_src>

<mosaic_0001>
module attributes {stable_mosaic.version = 11 : i64} {
  func.func @_mha_flash_kernel(%arg0: i32, %arg1: i32, %arg2: i32, %arg3: memref<1x8x32xf32, #tpu.memory_space<vmem>>, %arg4: memref<1x8x32xf32, #tpu.memory_space<vmem>>, %arg5: memref<32x32xf32, #tpu.memory_space<vmem>>, %arg6: memref<32x64xf32, #tpu.memory_space<vmem>>, %arg7: memref<32x32xf32, #tpu.memory_space<vmem>>, %arg8: memref<1x32xf32, #tpu.memory_space<vmem>>, %arg9: memref<1x8x32xf32, #tpu.memory_space<vmem>>, %arg10: memref<8x32xf32, #tpu.memory_space<vmem>>, %arg11: memref<8x4xf32, #tpu.memory_space<vmem>>, %arg12: memref<8x4xf32, #tpu.memory_space<vmem>>, %arg13: memref<8x32xf32, #tpu.memory_space<vmem>>) attributes {dimension_semantics = [#tpu.dimension_semantics<parallel>, #tpu.dimension_semantics<parallel>, #tpu.dimension_semantics<arbitrary>], iteration_bounds = array<i64: 2, 1, 1>, scalar_prefetch = 0 : i64, scratch_operands = 4 : i64, tpu.core_type = #tpu.core_type<tc>, window_params = [{transform_indices = @transform_0, window_bounds = array<i64: 1, 8, 32>}, {transform_indices = @transform_1, window_bounds = array<i64: 1, 8, 32>}, {pipeline_mode = #tpu.pipeline_mode<synchronous>, transform_indices = @transform_2, window_bounds = array<i64: 32, 32>}, {pipeline_mode = #tpu.pipeline_mode<synchronous>, transform_indices = @transform_3, window_bounds = array<i64: 32, 64>}, {pipeline_mode = #tpu.pipeline_mode<synchronous>, transform_indices = @transform_4, window_bounds = array<i64: 32, 32>}, {pipeline_mode = #tpu.pipeline_mode<synchronous>, transform_indices = @transform_5, window_bounds = array<i64: 1, 32>}, {transform_indices = @transform_6, window_bounds = array<i64: 1, 8, 32>}]} {
    %c0_i32 = arith.constant 0 : i32
    %0 = arith.cmpi eq, %arg2, %c0_i32 : i32
    %1 = arith.extui %0 : i1 to i32
    %c0_i32_0 = arith.constant 0 : i32
    %2 = arith.cmpi ne, %1, %c0_i32_0 : i32
    scf.if %2 {
      %c0 = arith.constant 0 : index
      %c0_5 = arith.constant 0 : index
      %c0_6 = arith.constant 0 : index
      %12 = vector.load %arg3[%c0, %c0_5, %c0_6] : memref<1x8x32xf32, #tpu.memory_space<vmem>>, vector<1x8x32xf32>
      %13 = vector.shape_cast %12 : vector<1x8x32xf32> to vector<8x32xf32>
      %c0_7 = arith.constant 0 : index
      %c0_8 = arith.constant 0 : index
      %14 = vector.load %arg5[%c0_7, %c0_8] : memref<32x32xf32, #tpu.memory_space<vmem>>, vector<32x32xf32>
      %cst = arith.constant dense<0.000000e+00> : vector<8x32xf32>
      %15 = tpu.matmul %13, %14, %cst {dimension_numbers = #tpu.dot_dimension_numbers<[1], [0], [0], [1], [0, 0, 1, 1], [], []>} : vector<8x32xf32>, vector<32x32xf32>, vector<8x32xf32> -> vector<8x32xf32>
      %c0_9 = arith.constant 0 : index
      %c0_10 = arith.constant 0 : index
      %16 = vector.load %arg10[%c0_9, %c0_10] : memref<8x32xf32, #tpu.memory_space<vmem>>, vector<8x32xf32>
      tpu.vector_store %arg10[%c0_9, %c0_10], %15 {strides = array<i32>} : memref<8x32xf32, #tpu.memory_space<vmem>>, vector<8x32xf32>,
      %cst_11 = arith.constant -1.000000e+30 : f32
      %17 = vector.broadcast %cst_11 : f32 to vector<8x4xf32>
      %c0_12 = arith.constant 0 : index
      %c0_13 = arith.constant 0 : index
      %18 = vector.load %arg11[%c0_12, %c0_13] : memref<8x4xf32, #tpu.memory_space<vmem>>, vector<8x4xf32>
      tpu.vector_store %arg11[%c0_12, %c0_13], %17 {strides = array<i32>} : memref<8x4xf32, #tpu.memory_space<vmem>>, vector<8x4xf32>,
      %cst_14 = arith.constant 0.000000e+00 : f32
      %19 = vector.broadcast %cst_14 : f32 to vector<8x4xf32>
      %c0_15 = arith.constant 0 : index
      %c0_16 = arith.constant 0 : index
      %20 = vector.load %arg12[%c0_15, %c0_16] : memref<8x4xf32, #tpu.memory_space<vmem>>, vector<8x4xf32>
      tpu.vector_store %arg12[%c0_15, %c0_16], %19 {strides = array<i32>} : memref<8x4xf32, #tpu.memory_space<vmem>>, vector<8x4xf32>,
      %cst_17 = arith.constant 0.000000e+00 : f32
      %21 = vector.broadcast %cst_17 : f32 to vector<8x32xf32>
      %c0_18 = arith.constant 0 : index
      %c0_19 = arith.constant 0 : index
      %22 = vector.load %arg13[%c0_18, %c0_19] : memref<8x32xf32, #tpu.memory_space<vmem>>, vector<8x32xf32>
      tpu.vector_store %arg13[%c0_18, %c0_19], %21 {strides = array<i32>} : memref<8x32xf32, #tpu.memory_space<vmem>>, vector<8x32xf32>,
    } else {
    }
    %c8_i32 = arith.constant 8 : i32
    %3 = arith.muli %arg1, %c8_i32 : i32
    %c7_i32 = arith.constant 7 : i32
    %4 = arith.addi %3, %c7_i32 : i32
    %c8_i32_1 = arith.constant 8 : i32
    %5 = arith.muli %arg2, %c8_i32_1 : i32
    %6 = arith.cmpi sle, %5, %4 : i32
    %7 = arith.extui %6 : i1 to i32
    %c0_i32_2 = arith.constant 0 : i32
    %8 = arith.cmpi ne, %7, %c0_i32_2 : i32
    scf.if %8 {
      %c0 = arith.constant 0 : index
      %c0_5 = arith.constant 0 : index
      %c0_6 = arith.constant 0 : index
      %12 = vector.load %arg4[%c0, %c0_5, %c0_6] : memref<1x8x32xf32, #tpu.memory_space<vmem>>, vector<1x8x32xf32>
      %13 = vector.shape_cast %12 : vector<1x8x32xf32> to vector<8x32xf32>
      %c0_7 = arith.constant 0 : index
      %c0_8 = arith.constant 0 : index
      %14 = vector.load %arg6[%c0_7, %c0_8] : memref<32x64xf32, #tpu.memory_space<vmem>>, vector<32x64xf32>
      %cst = arith.constant dense<0.000000e+00> : vector<8x64xf32>
      %15 = tpu.matmul %13, %14, %cst {dimension_numbers = #tpu.dot_dimension_numbers<[1], [0], [0], [1], [0, 0, 1, 1], [], []>} : vector<8x32xf32>, vector<32x64xf32>, vector<8x64xf32> -> vector<8x64xf32>
      %16 = vector.extract_strided_slice %15 {offsets = [0, 0], sizes = [8, 32], strides = [1, 1]} : vector<8x64xf32> to vector<8x32xf32>
      %17 = vector.extract_strided_slice %15 {offsets = [0, 32], sizes = [8, 32], strides = [1, 1]} : vector<8x64xf32> to vector<8x32xf32>
      %c8_i32_9 = arith.constant 8 : i32
      %18 = arith.muli %arg1, %c8_i32_9 : i32
      %19 = tpu.iota {dimensions = array<i32: 0>} : vector<8x8xi32>
      %20 = vector.broadcast %18 : i32 to vector<8x8xi32>
      %21 = arith.addi %20, %19 : vector<8x8xi32>
      %c8_i32_10 = arith.constant 8 : i32
      %22 = arith.muli %arg2, %c8_i32_10 : i32
      %23 = tpu.iota {dimensions = array<i32: 1>} : vector<8x8xi32>
      %24 = vector.broadcast %22 : i32 to vector<8x8xi32>
      %25 = arith.addi %24, %23 : vector<8x8xi32>
      %26 = arith.cmpi sle, %25, %21 : vector<8x8xi32>
      %c0_11 = arith.constant 0 : index
      %c0_12 = arith.constant 0 : index
      %27 = vector.load %arg10[%c0_11, %c0_12] : memref<8x32xf32, #tpu.memory_space<vmem>>, vector<8x8xf32>
      %28 = vector.extract_strided_slice %16 {offsets = [0, 0], sizes = [8, 8], strides = [1, 1]} : vector<8x32xf32> to vector<8x8xf32>
      %29 = vector.extract_strided_slice %17 {offsets = [0, 0], sizes = [8, 8], strides = [1, 1]} : vector<8x32xf32> to vector<8x8xf32>
      %30 = tpu.transpose %28, [1, 0] : vector<8x8xf32> -> vector<8x8xf32>
      %cst_13 = arith.constant dense<0.000000e+00> : vector<8x8xf32>
      %31 = tpu.matmul %27, %30, %cst_13 {dimension_numbers = #tpu.dot_dimension_numbers<[1], [0], [0], [1], [0, 0, 1, 1], [], []>} : vector<8x8xf32>, vector<8x8xf32>, vector<8x8xf32> -> vector<8x8xf32>
      %cst_14 = arith.constant 0.353553385 : f32
      %32 = vector.broadcast %cst_14 : f32 to vector<8x8xf32>
      %33 = arith.mulf %31, %32 : vector<8x8xf32>
      %cst_15 = arith.constant -1.000000e+30 : f32
      %34 = vector.broadcast %cst_15 : f32 to vector<8x8xf32>
      %35 = arith.select %26, %33, %34 : vector<8x8xi1>, vector<8x8xf32>
      %c0_16 = arith.constant 0 : index
      %c0_17 = arith.constant 0 : index
      %36 = vector.load %arg11[%c0_16, %c0_17] : memref<8x4xf32, #tpu.memory_space<vmem>>, vector<8x1xf32>
      %cst_18 = arith.constant dense<0xFF800000> : vector<8xf32>
      %37 = vector.multi_reduction <maximumf>, %35, %cst_18 [1] : vector<8x8xf32> to vector<8xf32>
      %38 = vector.shape_cast %37 : vector<8xf32> to vector<8x1xf32>
      %39 = arith.maximumf %36, %38 : vector<8x1xf32>
      %40 = arith.subf %36, %39 : vector<8x1xf32>
      %41 = math.exp %40 : vector<8x1xf32>
      %42 = vector.broadcast %39 : vector<8x1xf32> to vector<8x8xf32>
      %43 = arith.subf %35, %42 : vector<8x8xf32>
      %44 = math.exp %43 : vector<8x8xf32>
      %c0_19 = arith.constant 0 : index
      %c0_20 = arith.constant 0 : index
      %45 = vector.load %arg12[%c0_19, %c0_20] : memref<8x4xf32, #tpu.memory_space<vmem>>, vector<8x1xf32>
      %46 = arith.mulf %41, %45 : vector<8x1xf32>
      %cst_21 = arith.constant dense<0.000000e+00> : vector<8xf32>
      %47 = vector.multi_reduction <add>, %44, %cst_21 [1] : vector<8x8xf32> to vector<8xf32>
      %48 = vector.shape_cast %47 : vector<8xf32> to vector<8x1xf32>
      %49 = arith.addf %46, %48 : vector<8x1xf32>
      %c0_22 = arith.constant 0 : index
      %c0_23 = arith.constant 0 : index
      %50 = vector.load %arg12[%c0_22, %c0_23] : memref<8x4xf32, #tpu.memory_space<vmem>>, vector<8x1xf32>
      tpu.vector_store %arg12[%c0_22, %c0_23], %49 {strides = array<i32>} : memref<8x4xf32, #tpu.memory_space<vmem>>, vector<8x1xf32>,
      %c0_24 = arith.constant 0 : index
      %c0_25 = arith.constant 0 : index
      %51 = vector.load %arg13[%c0_24, %c0_25] : memref<8x32xf32, #tpu.memory_space<vmem>>, vector<8x8xf32>
      %52 = vector.broadcast %41 : vector<8x1xf32> to vector<8x8xf32>
      %53 = arith.mulf %52, %51 : vector<8x8xf32>
      %cst_26 = arith.constant dense<0.000000e+00> : vector<8x8xf32>
      %54 = tpu.matmul %44, %29, %cst_26 {dimension_numbers = #tpu.dot_dimension_numbers<[1], [0], [0], [1], [0, 0, 1, 1], [], []>} : vector<8x8xf32>, vector<8x8xf32>, vector<8x8xf32> -> vector<8x8xf32>
      %55 = arith.addf %53, %54 : vector<8x8xf32>
      %c0_27 = arith.constant 0 : index
      %c0_28 = arith.constant 0 : index
      %56 = vector.load %arg13[%c0_27, %c0_28] : memref<8x32xf32, #tpu.memory_space<vmem>>, vector<8x8xf32>
      tpu.vector_store %arg13[%c0_27, %c0_28], %55 {strides = array<i32>} : memref<8x32xf32, #tpu.memory_space<vmem>>, vector<8x8xf32>,
      %c0_29 = arith.constant 0 : index
      %c0_30 = arith.constant 0 : index
      %57 = vector.load %arg11[%c0_29, %c0_30] : memref<8x4xf32, #tpu.memory_space<vmem>>, vector<8x1xf32>
      tpu.vector_store %arg11[%c0_29, %c0_30], %39 {strides = array<i32>} : memref<8x4xf32, #tpu.memory_space<vmem>>, vector<8x1xf32>,
      %c0_31 = arith.constant 0 : index
      %c8 = arith.constant 8 : index
      %58 = vector.load %arg10[%c0_31, %c8] : memref<8x32xf32, #tpu.memory_space<vmem>>, vector<8x8xf32>
      %59 = vector.extract_strided_slice %16 {offsets = [0, 8], sizes = [8, 8], strides = [1, 1]} : vector<8x32xf32> to vector<8x8xf32>
      %60 = vector.extract_strided_slice %17 {offsets = [0, 8], sizes = [8, 8], strides = [1, 1]} : vector<8x32xf32> to vector<8x8xf32>
      %61 = tpu.transpose %59, [1, 0] : vector<8x8xf32> -> vector<8x8xf32>
      %cst_32 = arith.constant dense<0.000000e+00> : vector<8x8xf32>
      %62 = tpu.matmul %58, %61, %cst_32 {dimension_numbers = #tpu.dot_dimension_numbers<[1], [0], [0], [1], [0, 0, 1, 1], [], []>} : vector<8x8xf32>, vector<8x8xf32>, vector<8x8xf32> -> vector<8x8xf32>
      %cst_33 = arith.constant 0.353553385 : f32
      %63 = vector.broadcast %cst_33 : f32 to vector<8x8xf32>
      %64 = arith.mulf %62, %63 : vector<8x8xf32>
      %cst_34 = arith.constant -1.000000e+30 : f32
      %65 = vector.broadcast %cst_34 : f32 to vector<8x8xf32>
      %66 = arith.select %26, %64, %65 : vector<8x8xi1>, vector<8x8xf32>
      %c0_35 = arith.constant 0 : index
      %c1 = arith.constant 1 : index
      %67 = vector.load %arg11[%c0_35, %c1] : memref<8x4xf32, #tpu.memory_space<vmem>>, vector<8x1xf32>
      %cst_36 = arith.constant dense<0xFF800000> : vector<8xf32>
      %68 = vector.multi_reduction <maximumf>, %66, %cst_36 [1] : vector<8x8xf32> to vector<8xf32>
      %69 = vector.shape_cast %68 : vector<8xf32> to vector<8x1xf32>
      %70 = arith.maximumf %67, %69 : vector<8x1xf32>
      %71 = arith.subf %67, %70 : vector<8x1xf32>
      %72 = math.exp %71 : vector<8x1xf32>
      %73 = vector.broadcast %70 : vector<8x1xf32> to vector<8x8xf32>
      %74 = arith.subf %66, %73 : vector<8x8xf32>
      %75 = math.exp %74 : vector<8x8xf32>
      %c0_37 = arith.constant 0 : index
      %c1_38 = arith.constant 1 : index
      %76 = vector.load %arg12[%c0_37, %c1_38] : memref<8x4xf32, #tpu.memory_space<vmem>>, vector<8x1xf32>
      %77 = arith.mulf %72, %76 : vector<8x1xf32>
      %cst_39 = arith.constant dense<0.000000e+00> : vector<8xf32>
      %78 = vector.multi_reduction <add>, %75, %cst_39 [1] : vector<8x8xf32> to vector<8xf32>
      %79 = vector.shape_cast %78 : vector<8xf32> to vector<8x1xf32>
      %80 = arith.addf %77, %79 : vector<8x1xf32>
      %c0_40 = arith.constant 0 : index
      %c1_41 = arith.constant 1 : index
      %81 = vector.load %arg12[%c0_40, %c1_41] : memref<8x4xf32, #tpu.memory_space<vmem>>, vector<8x1xf32>
      tpu.vector_store %arg12[%c0_40, %c1_41], %80 {strides = array<i32>} : memref<8x4xf32, #tpu.memory_space<vmem>>, vector<8x1xf32>,
      %c0_42 = arith.constant 0 : index
      %c8_43 = arith.constant 8 : index
      %82 = vector.load %arg13[%c0_42, %c8_43] : memref<8x32xf32, #tpu.memory_space<vmem>>, vector<8x8xf32>
      %83 = vector.broadcast %72 : vector<8x1xf32> to vector<8x8xf32>
      %84 = arith.mulf %83, %82 : vector<8x8xf32>
      %cst_44 = arith.constant dense<0.000000e+00> : vector<8x8xf32>
      %85 = tpu.matmul %75, %60, %cst_44 {dimension_numbers = #tpu.dot_dimension_numbers<[1], [0], [0], [1], [0, 0, 1, 1], [], []>} : vector<8x8xf32>, vector<8x8xf32>, vector<8x8xf32> -> vector<8x8xf32>
      %86 = arith.addf %84, %85 : vector<8x8xf32>
      %c0_45 = arith.constant 0 : index
      %c8_46 = arith.constant 8 : index
      %87 = vector.load %arg13[%c0_45, %c8_46] : memref<8x32xf32, #tpu.memory_space<vmem>>, vector<8x8xf32>
      tpu.vector_store %arg13[%c0_45, %c8_46], %86 {strides = array<i32>} : memref<8x32xf32, #tpu.memory_space<vmem>>, vector<8x8xf32>,
      %c0_47 = arith.constant 0 : index
      %c1_48 = arith.constant 1 : index
      %88 = vector.load %arg11[%c0_47, %c1_48] : memref<8x4xf32, #tpu.memory_space<vmem>>, vector<8x1xf32>
      tpu.vector_store %arg11[%c0_47, %c1_48], %70 {strides = array<i32>} : memref<8x4xf32, #tpu.memory_space<vmem>>, vector<8x1xf32>,
      %c0_49 = arith.constant 0 : index
      %c16 = arith.constant 16 : index
      %89 = vector.load %arg10[%c0_49, %c16] : memref<8x32xf32, #tpu.memory_space<vmem>>, vector<8x8xf32>
      %90 = vector.extract_strided_slice %16 {offsets = [0, 16], sizes = [8, 8], strides = [1, 1]} : vector<8x32xf32> to vector<8x8xf32>
      %91 = vector.extract_strided_slice %17 {offsets = [0, 16], sizes = [8, 8], strides = [1, 1]} : vector<8x32xf32> to vector<8x8xf32>
      %92 = tpu.transpose %90, [1, 0] : vector<8x8xf32> -> vector<8x8xf32>
      %cst_50 = arith.constant dense<0.000000e+00> : vector<8x8xf32>
      %93 = tpu.matmul %89, %92, %cst_50 {dimension_numbers = #tpu.dot_dimension_numbers<[1], [0], [0], [1], [0, 0, 1, 1], [], []>} : vector<8x8xf32>, vector<8x8xf32>, vector<8x8xf32> -> vector<8x8xf32>
      %cst_51 = arith.constant 0.353553385 : f32
      %94 = vector.broadcast %cst_51 : f32 to vector<8x8xf32>
      %95 = arith.mulf %93, %94 : vector<8x8xf32>
      %cst_52 = arith.constant -1.000000e+30 : f32
      %96 = vector.broadcast %cst_52 : f32 to vector<8x8xf32>
      %97 = arith.select %26, %95, %96 : vector<8x8xi1>, vector<8x8xf32>
      %c0_53 = arith.constant 0 : index
      %c2 = arith.constant 2 : index
      %98 = vector.load %arg11[%c0_53, %c2] : memref<8x4xf32, #tpu.memory_space<vmem>>, vector<8x1xf32>
      %cst_54 = arith.constant dense<0xFF800000> : vector<8xf32>
      %99 = vector.multi_reduction <maximumf>, %97, %cst_54 [1] : vector<8x8xf32> to vector<8xf32>
      %100 = vector.shape_cast %99 : vector<8xf32> to vector<8x1xf32>
      %101 = arith.maximumf %98, %100 : vector<8x1xf32>
      %102 = arith.subf %98, %101 : vector<8x1xf32>
      %103 = math.exp %102 : vector<8x1xf32>
      %104 = vector.broadcast %101 : vector<8x1xf32> to vector<8x8xf32>
      %105 = arith.subf %97, %104 : vector<8x8xf32>
      %106 = math.exp %105 : vector<8x8xf32>
      %c0_55 = arith.constant 0 : index
      %c2_56 = arith.constant 2 : index
      %107 = vector.load %arg12[%c0_55, %c2_56] : memref<8x4xf32, #tpu.memory_space<vmem>>, vector<8x1xf32>
      %108 = arith.mulf %103, %107 : vector<8x1xf32>
      %cst_57 = arith.constant dense<0.000000e+00> : vector<8xf32>
      %109 = vector.multi_reduction <add>, %106, %cst_57 [1] : vector<8x8xf32> to vector<8xf32>
      %110 = vector.shape_cast %109 : vector<8xf32> to vector<8x1xf32>
      %111 = arith.addf %108, %110 : vector<8x1xf32>
      %c0_58 = arith.constant 0 : index
      %c2_59 = arith.constant 2 : index
      %112 = vector.load %arg12[%c0_58, %c2_59] : memref<8x4xf32, #tpu.memory_space<vmem>>, vector<8x1xf32>
      tpu.vector_store %arg12[%c0_58, %c2_59], %111 {strides = array<i32>} : memref<8x4xf32, #tpu.memory_space<vmem>>, vector<8x1xf32>,
      %c0_60 = arith.constant 0 : index
      %c16_61 = arith.constant 16 : index
      %113 = vector.load %arg13[%c0_60, %c16_61] : memref<8x32xf32, #tpu.memory_space<vmem>>, vector<8x8xf32>
      %114 = vector.broadcast %103 : vector<8x1xf32> to vector<8x8xf32>
      %115 = arith.mulf %114, %113 : vector<8x8xf32>
      %cst_62 = arith.constant dense<0.000000e+00> : vector<8x8xf32>
      %116 = tpu.matmul %106, %91, %cst_62 {dimension_numbers = #tpu.dot_dimension_numbers<[1], [0], [0], [1], [0, 0, 1, 1], [], []>} : vector<8x8xf32>, vector<8x8xf32>, vector<8x8xf32> -> vector<8x8xf32>
      %117 = arith.addf %115, %116 : vector<8x8xf32>
      %c0_63 = arith.constant 0 : index
      %c16_64 = arith.constant 16 : index
      %118 = vector.load %arg13[%c0_63, %c16_64] : memref<8x32xf32, #tpu.memory_space<vmem>>, vector<8x8xf32>
      tpu.vector_store %arg13[%c0_63, %c16_64], %117 {strides = array<i32>} : memref<8x32xf32, #tpu.memory_space<vmem>>, vector<8x8xf32>,
      %c0_65 = arith.constant 0 : index
      %c2_66 = arith.constant 2 : index
      %119 = vector.load %arg11[%c0_65, %c2_66] : memref<8x4xf32, #tpu.memory_space<vmem>>, vector<8x1xf32>
      tpu.vector_store %arg11[%c0_65, %c2_66], %101 {strides = array<i32>} : memref<8x4xf32, #tpu.memory_space<vmem>>, vector<8x1xf32>,
      %c0_67 = arith.constant 0 : index
      %c24 = arith.constant 24 : index
      %120 = vector.load %arg10[%c0_67, %c24] : memref<8x32xf32, #tpu.memory_space<vmem>>, vector<8x8xf32>
      %121 = vector.extract_strided_slice %16 {offsets = [0, 24], sizes = [8, 8], strides = [1, 1]} : vector<8x32xf32> to vector<8x8xf32>
      %122 = vector.extract_strided_slice %17 {offsets = [0, 24], sizes = [8, 8], strides = [1, 1]} : vector<8x32xf32> to vector<8x8xf32>
      %123 = tpu.transpose %121, [1, 0] : vector<8x8xf32> -> vector<8x8xf32>
      %cst_68 = arith.constant dense<0.000000e+00> : vector<8x8xf32>
      %124 = tpu.matmul %120, %123, %cst_68 {dimension_numbers = #tpu.dot_dimension_numbers<[1], [0], [0], [1], [0, 0, 1, 1], [], []>} : vector<8x8xf32>, vector<8x8xf32>, vector<8x8xf32> -> vector<8x8xf32>
      %cst_69 = arith.constant 0.353553385 : f32
      %125 = vector.broadcast %cst_69 : f32 to vector<8x8xf32>
      %126 = arith.mulf %124, %125 : vector<8x8xf32>
      %cst_70 = arith.constant -1.000000e+30 : f32
      %127 = vector.broadcast %cst_70 : f32 to vector<8x8xf32>
      %128 = arith.select %26, %126, %127 : vector<8x8xi1>, vector<8x8xf32>
      %c0_71 = arith.constant 0 : index
      %c3 = arith.constant 3 : index
      %129 = vector.load %arg11[%c0_71, %c3] : memref<8x4xf32, #tpu.memory_space<vmem>>, vector<8x1xf32>
      %cst_72 = arith.constant dense<0xFF800000> : vector<8xf32>
      %130 = vector.multi_reduction <maximumf>, %128, %cst_72 [1] : vector<8x8xf32> to vector<8xf32>
      %131 = vector.shape_cast %130 : vector<8xf32> to vector<8x1xf32>
      %132 = arith.maximumf %129, %131 : vector<8x1xf32>
      %133 = arith.subf %129, %132 : vector<8x1xf32>
      %134 = math.exp %133 : vector<8x1xf32>
      %135 = vector.broadcast %132 : vector<8x1xf32> to vector<8x8xf32>
      %136 = arith.subf %128, %135 : vector<8x8xf32>
      %137 = math.exp %136 : vector<8x8xf32>
      %c0_73 = arith.constant 0 : index
      %c3_74 = arith.constant 3 : index
      %138 = vector.load %arg12[%c0_73, %c3_74] : memref<8x4xf32, #tpu.memory_space<vmem>>, vector<8x1xf32>
      %139 = arith.mulf %134, %138 : vector<8x1xf32>
      %cst_75 = arith.constant dense<0.000000e+00> : vector<8xf32>
      %140 = vector.multi_reduction <add>, %137, %cst_75 [1] : vector<8x8xf32> to vector<8xf32>
      %141 = vector.shape_cast %140 : vector<8xf32> to vector<8x1xf32>
      %142 = arith.addf %139, %141 : vector<8x1xf32>
      %c0_76 = arith.constant 0 : index
      %c3_77 = arith.constant 3 : index
      %143 = vector.load %arg12[%c0_76, %c3_77] : memref<8x4xf32, #tpu.memory_space<vmem>>, vector<8x1xf32>
      tpu.vector_store %arg12[%c0_76, %c3_77], %142 {strides = array<i32>} : memref<8x4xf32, #tpu.memory_space<vmem>>, vector<8x1xf32>,
      %c0_78 = arith.constant 0 : index
      %c24_79 = arith.constant 24 : index
      %144 = vector.load %arg13[%c0_78, %c24_79] : memref<8x32xf32, #tpu.memory_space<vmem>>, vector<8x8xf32>
      %145 = vector.broadcast %134 : vector<8x1xf32> to vector<8x8xf32>
      %146 = arith.mulf %145, %144 : vector<8x8xf32>
      %cst_80 = arith.constant dense<0.000000e+00> : vector<8x8xf32>
      %147 = tpu.matmul %137, %122, %cst_80 {dimension_numbers = #tpu.dot_dimension_numbers<[1], [0], [0], [1], [0, 0, 1, 1], [], []>} : vector<8x8xf32>, vector<8x8xf32>, vector<8x8xf32> -> vector<8x8xf32>
      %148 = arith.addf %146, %147 : vector<8x8xf32>
      %c0_81 = arith.constant 0 : index
      %c24_82 = arith.constant 24 : index
      %149 = vector.load %arg13[%c0_81, %c24_82] : memref<8x32xf32, #tpu.memory_space<vmem>>, vector<8x8xf32>
      tpu.vector_store %arg13[%c0_81, %c24_82], %148 {strides = array<i32>} : memref<8x32xf32, #tpu.memory_space<vmem>>, vector<8x8xf32>,
      %c0_83 = arith.constant 0 : index
      %c3_84 = arith.constant 3 : index
      %150 = vector.load %arg11[%c0_83, %c3_84] : memref<8x4xf32, #tpu.memory_space<vmem>>, vector<8x1xf32>
      tpu.vector_store %arg11[%c0_83, %c3_84], %132 {strides = array<i32>} : memref<8x4xf32, #tpu.memory_space<vmem>>, vector<8x1xf32>,
    } else {
    }
    %c0_i32_3 = arith.constant 0 : i32
    %9 = arith.cmpi eq, %arg2, %c0_i32_3 : i32
    %10 = arith.extui %9 : i1 to i32
    %c0_i32_4 = arith.constant 0 : i32
    %11 = arith.cmpi ne, %10, %c0_i32_4 : i32
    scf.if %11 {
      %c0 = arith.constant 0 : index
      %c0_5 = arith.constant 0 : index
      %12 = vector.load %arg12[%c0, %c0_5] : memref<8x4xf32, #tpu.memory_space<vmem>>, vector<8x4xf32>
      %13 = tpu.reciprocal %12 {approx = true} : vector<8x4xf32> -> vector<8x4xf32>
      %c0_6 = arith.constant 0 : index
      %c0_7 = arith.constant 0 : index
      %14 = vector.load %arg13[%c0_6, %c0_7] : memref<8x32xf32, #tpu.memory_space<vmem>>, vector<8x8xf32>
      %15 = vector.extract_strided_slice %13 {offsets = [0, 0], sizes = [8, 1], strides = [1, 1]} : vector<8x4xf32> to vector<8x1xf32>
      %16 = vector.broadcast %15 : vector<8x1xf32> to vector<8x8xf32>
      %17 = arith.mulf %14, %16 : vector<8x8xf32>
      %c0_8 = arith.constant 0 : index
      %c0_9 = arith.constant 0 : index
      %18 = vector.load %arg13[%c0_8, %c0_9] : memref<8x32xf32, #tpu.memory_space<vmem>>, vector<8x8xf32>
      tpu.vector_store %arg13[%c0_8, %c0_9], %17 {strides = array<i32>} : memref<8x32xf32, #tpu.memory_space<vmem>>, vector<8x8xf32>,
      %c0_10 = arith.constant 0 : index
      %c8 = arith.constant 8 : index
      %19 = vector.load %arg13[%c0_10, %c8] : memref<8x32xf32, #tpu.memory_space<vmem>>, vector<8x8xf32>
      %20 = vector.extract_strided_slice %13 {offsets = [0, 1], sizes = [8, 1], strides = [1, 1]} : vector<8x4xf32> to vector<8x1xf32>
      %21 = vector.broadcast %20 : vector<8x1xf32> to vector<8x8xf32>
      %22 = arith.mulf %19, %21 : vector<8x8xf32>
      %c0_11 = arith.constant 0 : index
      %c8_12 = arith.constant 8 : index
      %23 = vector.load %arg13[%c0_11, %c8_12] : memref<8x32xf32, #tpu.memory_space<vmem>>, vector<8x8xf32>
      tpu.vector_store %arg13[%c0_11, %c8_12], %22 {strides = array<i32>} : memref<8x32xf32, #tpu.memory_space<vmem>>, vector<8x8xf32>,
      %c0_13 = arith.constant 0 : index
      %c16 = arith.constant 16 : index
      %24 = vector.load %arg13[%c0_13, %c16] : memref<8x32xf32, #tpu.memory_space<vmem>>, vector<8x8xf32>
      %25 = vector.extract_strided_slice %13 {offsets = [0, 2], sizes = [8, 1], strides = [1, 1]} : vector<8x4xf32> to vector<8x1xf32>
      %26 = vector.broadcast %25 : vector<8x1xf32> to vector<8x8xf32>
      %27 = arith.mulf %24, %26 : vector<8x8xf32>
      %c0_14 = arith.constant 0 : index
      %c16_15 = arith.constant 16 : index
      %28 = vector.load %arg13[%c0_14, %c16_15] : memref<8x32xf32, #tpu.memory_space<vmem>>, vector<8x8xf32>
      tpu.vector_store %arg13[%c0_14, %c16_15], %27 {strides = array<i32>} : memref<8x32xf32, #tpu.memory_space<vmem>>, vector<8x8xf32>,
      %c0_16 = arith.constant 0 : index
      %c24 = arith.constant 24 : index
      %29 = vector.load %arg13[%c0_16, %c24] : memref<8x32xf32, #tpu.memory_space<vmem>>, vector<8x8xf32>
      %30 = vector.extract_strided_slice %13 {offsets = [0, 3], sizes = [8, 1], strides = [1, 1]} : vector<8x4xf32> to vector<8x1xf32>
      %31 = vector.broadcast %30 : vector<8x1xf32> to vector<8x8xf32>
      %32 = arith.mulf %29, %31 : vector<8x8xf32>
      %c0_17 = arith.constant 0 : index
      %c24_18 = arith.constant 24 : index
      %33 = vector.load %arg13[%c0_17, %c24_18] : memref<8x32xf32, #tpu.memory_space<vmem>>, vector<8x8xf32>
      tpu.vector_store %arg13[%c0_17, %c24_18], %32 {strides = array<i32>} : memref<8x32xf32, #tpu.memory_space<vmem>>, vector<8x8xf32>,
      %c0_19 = arith.constant 0 : index
      %c0_20 = arith.constant 0 : index
      %34 = vector.load %arg13[%c0_19, %c0_20] : memref<8x32xf32, #tpu.memory_space<vmem>>, vector<8x32xf32>
      %c0_21 = arith.constant 0 : index
      %c0_22 = arith.constant 0 : index
      %35 = vector.load %arg7[%c0_21, %c0_22] : memref<32x32xf32, #tpu.memory_space<vmem>>, vector<32x32xf32>
      %cst = arith.constant dense<0.000000e+00> : vector<8x32xf32>
      %36 = tpu.matmul %34, %35, %cst {dimension_numbers = #tpu.dot_dimension_numbers<[1], [0], [0], [1], [0, 0, 1, 1], [], []>} : vector<8x32xf32>, vector<32x32xf32>, vector<8x32xf32> -> vector<8x32xf32>
      %c0_23 = arith.constant 0 : index
      %c0_24 = arith.constant 0 : index
      %37 = vector.load %arg8[%c0_23, %c0_24] : memref<1x32xf32, #tpu.memory_space<vmem>>, vector<1x32xf32>
      %38 = vector.broadcast %37 : vector<1x32xf32> to vector<8x32xf32>
      %39 = arith.addf %36, %38 : vector<8x32xf32>
      %c0_25 = arith.constant 0 : index
      %c0_26 = arith.constant 0 : index
      %c0_27 = arith.constant 0 : index
      %40 = vector.load %arg9[%c0_25, %c0_26, %c0_27] : memref<1x8x32xf32, #tpu.memory_space<vmem>>, vector<1x8x32xf32>
      %41 = vector.shape_cast %40 : vector<1x8x32xf32> to vector<8x32xf32>
      %42 = vector.shape_cast %39 : vector<8x32xf32> to vector<1x8x32xf32>
      tpu.vector_store %arg9[%c0_25, %c0_26, %c0_27], %42 {strides = array<i32>} : memref<1x8x32xf32, #tpu.memory_space<vmem>>, vector<1x8x32xf32>,
    } else {
    }
    return
  }
  func.func @transform_0(%arg0: i32, %arg1: i32, %arg2: i32) -> (i32, i32, i32) {
    %c0_i32 = arith.constant 0 : i32
    %c0_i32_0 = arith.constant 0 : i32
    return %arg0, %arg1, %c0_i32 : i32, i32, i32
  }
  func.func @transform_1(%arg0: i32, %arg1: i32, %arg2: i32) -> (i32, i32, i32) {
    %c0_i32 = arith.constant 0 : i32
    %c0_i32_0 = arith.constant 0 : i32
    return %arg0, %arg2, %c0_i32 : i32, i32, i32
  }
  func.func @transform_2(%arg0: i32, %arg1: i32, %arg2: i32) -> (i32, i32) {
    %c0_i32 = arith.constant 0 : i32
    %c0_i32_0 = arith.constant 0 : i32
    %c0_i32_1 = arith.constant 0 : i32
    return %c0_i32, %c0_i32_0 : i32, i32
  }
  func.func @transform_3(%arg0: i32, %arg1: i32, %arg2: i32) -> (i32, i32) {
    %c0_i32 = arith.constant 0 : i32
    %c0_i32_0 = arith.constant 0 : i32
    %c0_i32_1 = arith.constant 0 : i32
    return %c0_i32, %c0_i32_0 : i32, i32
  }
  func.func @transform_4(%arg0: i32, %arg1: i32, %arg2: i32) -> (i32, i32) {
    %c0_i32 = arith.constant 0 : i32
    %c0_i32_0 = arith.constant 0 : i32
    %c0_i32_1 = arith.constant 0 : i32
    return %c0_i32, %c0_i32_0 : i32, i32
  }
  func.func @transform_5(%arg0: i32, %arg1: i32, %arg2: i32) -> (i32, i32) {
    %c0_i32 = arith.constant 0 : i32
    %c0_i32_0 = arith.constant 0 : i32
    %c0_i32_1 = arith.constant 0 : i32
    return %c0_i32, %c0_i32_0 : i32, i32
  }
  func.func @transform_6(%arg0: i32, %arg1: i32, %arg2: i32) -> (i32, i32, i32) {
    %c0_i32 = arith.constant 0 : i32
    %c0_i32_0 = arith.constant 0 : i32
    return %arg0, %arg1, %c0_i32 : i32, i32, i32
  }
}

</mosaic_0001>

<llo_original>
// kernel: tpu_custom_call.1
$region0: #{tpu_custom_call.1}
  #allocation0 [shape = 'u32[]', space=smem, size = 0x4, offset = 0x4, fixed_abs, tag = 'smem constant byte address 0x4 - core index']
  #allocation1 [shape = 'u32[144,128]{1,0:T(1,128)}', space=vmem, size = 0x12000, scoped, tag = 'internal scratch']
  #allocation2 [shape = 'f32[8,32]{1,0:T(8,128)}', space=vmem, size = 0x1000, scoped, tag = 'scratch operand']
  #allocation3 [shape = 'f32[8,4]{1,0:T(8,128)}', space=vmem, size = 0x1000, scoped, tag = 'scratch operand']
  #allocation4 [shape = 'f32[8,4]{1,0:T(8,128)}', space=vmem, size = 0x1000, scoped, tag = 'scratch operand']
  #allocation5 [shape = 'f32[8,32]{1,0:T(8,128)}', space=vmem, size = 0x1000, scoped, tag = 'scratch operand']
  %s0 = inlined_call_operand.hbm [shape: f32[2,8,32], index: 0, kind: input, shape index: {}]
  %s1 = inlined_call_operand.hbm [shape: f32[2,8,32], index: 1, kind: input, shape index: {}]
  %s2 = inlined_call_operand.hbm [shape: f32[32,32], index: 2, kind: input, shape index: {}]
  %s3 = inlined_call_operand.hbm [shape: f32[32,64], index: 3, kind: input, shape index: {}]
  %s4 = inlined_call_operand.hbm [shape: f32[32,32], index: 4, kind: input, shape index: {}]
  %s5 = inlined_call_operand.hbm [shape: f32[1,32], index: 5, kind: input, shape index: {}]
  %s6 = inlined_call_operand.hbm [shape: f32[2,8,32], index: 6, kind: output, shape index: {}]
  %s7 = sld [smem:[#allocation0]]
  $region93: #{tpu_custom_call.1} parent=0
    _
  %s9 = ssub.s32 1, %s7
  %s10 = scalar_select 0, %s9, %s7
  $region1: #{tpu_custom_call.1} parent=0
    #allocation6 [shape = 'u8[8192]{0}', space=vmem, size = 0x2000, scoped, tag = 'input window, operand 0']
    #allocation7 [shape = 's32[2]{0}', space=sflag, size = 0x8, scoped, tag = 'scoped memory for tpu_custom_call.1']
    #allocation8 [shape = 's32[2]{0}', space=sflag, size = 0x8, scoped, tag = 'scoped memory for tpu_custom_call.1']
    #allocation9 [shape = 'u8[8192]{0}', space=vmem, size = 0x2000, scoped, tag = 'input window, operand 1']
    #allocation10 [shape = 's32[2]{0}', space=sflag, size = 0x8, scoped, tag = 'scoped memory for tpu_custom_call.1']
    #allocation11 [shape = 'u8[16384]{0}', space=vmem, size = 0x4000, scoped, tag = 'input window, operand 2, single buffered']
    #allocation12 [shape = 'u8[16384]{0}', space=vmem, size = 0x4000, scoped, tag = 'input window, operand 3, single buffered']
    #allocation13 [shape = 's32[1]{0}', space=sflag, size = 0x4, scoped, tag = 'scoped memory for tpu_custom_call.1']
    #allocation14 [shape = 'u8[16384]{0}', space=vmem, size = 0x4000, scoped, tag = 'input window, operand 4, single buffered']
    #allocation15 [shape = 'u8[512]{0}', space=vmem, size = 0x400, scoped, tag = 'input window, operand 5, single buffered']
    #allocation16 [shape = 's32[1]{0}', space=sflag, size = 0x4, scoped, tag = 'scoped memory for tpu_custom_call.1']
    #allocation17 [shape = 'u8[8192]{0}', space=vmem, size = 0x2000, scoped, tag = 'output window, operand 0']
    %11 = vsyncpa [#allocation7], 0
    %s12 = scalar_lea.sflag [#allocation7], 1
    %13 = vsyncpa %s12, 0
    %14 = vsyncpa [#allocation10], 0
    %s15 = scalar_lea.sflag [#allocation10], 1
    %16 = vsyncpa %s15, 0
    %17 = vsyncpa [#allocation13], 0
    %18 = vsyncpa [#allocation16], 0
    %19 = vsyncpa [#allocation8], 0
    %s20 = scalar_lea.sflag [#allocation8], 1
    %21 = vsyncpa %s20, 0
    loop: start=0, step=1, limit=4
    $region2: #{tpu_custom_call.1} parent=1 // loop_pre_header
      _
    $region3: #{tpu_custom_call.1} parent=1 // loop_header
      %s23 = sphi 0, %s27
      %p24 = scmp.ge.s32.totalorder %s23, 4
      %s30 = sphi 0, %s49
      %s31 = sphi 0, %s45
      %s32 = sphi 0, %s41
      %s33 = sphi 0, %s30
      %s34 = sphi 0, %s31
      %s35 = sphi 0, %s32
      %s36 = sphi 0, %s33
      %s37 = sphi 0, %s34
      %s38 = sphi 0, %s35
      %s54 = sphi 0, %s56
      %s57 = sphi 0, %s54
      %s58 = sphi 0, %s57
      %s74 = sphi 0, %s58
      %s82 = sphi 0, %s84
      %s85 = sphi 0, %s82
      %s86 = sphi 0, %s85
      %s102 = sphi 0, %s86
      %s106 = sphi 0, %s106
      %s108 = sphi 0, %s106
      %s109 = sphi 0, %s108
      %s123 = sphi 0, %s109
      %s127 = sphi 0, %s127
      %s129 = sphi 0, %s127
      %s130 = sphi 0, %s129
      %s144 = sphi 0, %s130
      %s148 = sphi 0, %s148
      %s150 = sphi 0, %s148
      %s151 = sphi 0, %s150
      %s165 = sphi 0, %s151
      %s169 = sphi 0, %s169
      %s171 = sphi 0, %s169
      %s172 = sphi 0, %s171
      %s186 = sphi 0, %s172
      %s194 = sphi 0, %s196
      %s197 = sphi 0, %s194
      %s198 = sphi 0, %s197
      %s214 = sphi 0, %s198
    $region4: #{tpu_custom_call.1} parent=1 // loop_header_branch
      %26 = sbr.rel (%p24) target = $region8
    $region5: #{tpu_custom_call.1} parent=1 // loop_body
      %s28 = ssub.s32 %s23, 1
      %s29 = ssub.s32 %s23, 2
      %s39 = sadd.s32 1, %s32
      %p40 = scmp.ge.s32.totalorder %s39, 1
      %s41 = scalar_select %p40, 0, %s39
      %s42 = sadd.s32 1, %s31
      %s43 = scalar_select %p40, %s42, %s31
      %p44 = scmp.ge.s32.totalorder %s43, 1
      %s45 = scalar_select %p44, 0, %s43
      %s46 = sadd.s32 1, %s30
      %s47 = scalar_select %p44, %s46, %s30
      %p48 = scmp.ge.s32.totalorder %s47, 2
      %s49 = scalar_select %p48, 0, %s47
      %s50 = ssub.s32 %s30, %s49
      %s51 = ssub.s32 %s31, %s45
      %s52 = sor.u32 %s50, %s51
      %p53 = scmp.eq.s32.totalorder %s52, 0
      %s55 = sadd.s32 %s54, 1
      %s56 = scalar_select %p53, %s54, %s55
      %p59 = pneg %p53
      %p60 = scmp.eq.s32.totalorder %s23, 1
      %p61 = por %p59, %p60
      %p62 = scmp.ne.s32.totalorder %s54, %s57
      %p63 = scmp.eq.s32.totalorder %s23, 0
      %p64 = por %p62, %p63
      %p65 = scmp.ne.s32.totalorder %s54, %s57
      %p66 = scmp.eq.s32.totalorder %s28, 1
      %p67 = por %p65, %p66
      %p68 = scmp.ne.s32.totalorder %s57, %s58
      %p69 = scmp.eq.s32.totalorder %s28, 0
      %p70 = por %p68, %p69
      %p71 = scmp.ne.s32.totalorder %s57, %s58
      %p72 = scmp.eq.s32.totalorder %s29, 1
      %p73 = por %p71, %p72
      %p75 = scmp.ne.s32.totalorder %s58, %s74
      %p76 = scmp.eq.s32.totalorder %s29, 0
      %p77 = por %p75, %p76
      %s78 = ssub.s32 %s30, %s49
      %s79 = ssub.s32 %s32, %s41
      %s80 = sor.u32 %s78, %s79
      %p81 = scmp.eq.s32.totalorder %s80, 0
      %s83 = sadd.s32 %s82, 1
      %s84 = scalar_select %p81, %s82, %s83
      %p87 = pneg %p81
      %p88 = scmp.eq.s32.totalorder %s23, 1
      %p89 = por %p87, %p88
      %p90 = scmp.ne.s32.totalorder %s82, %s85
      %p91 = scmp.eq.s32.totalorder %s23, 0
      %p92 = por %p90, %p91
      %p93 = scmp.ne.s32.totalorder %s82, %s85
      %p94 = scmp.eq.s32.totalorder %s28, 1
      %p95 = por %p93, %p94
      %p96 = scmp.ne.s32.totalorder %s85, %s86
      %p97 = scmp.eq.s32.totalorder %s28, 0
      %p98 = por %p96, %p97
      %p99 = scmp.ne.s32.totalorder %s85, %s86
      %p100 = scmp.eq.s32.totalorder %s29, 1
      %p101 = por %p99, %p100
      %p103 = scmp.ne.s32.totalorder %s86, %s102
      %p104 = scmp.eq.s32.totalorder %s29, 0
      %p105 = por %p103, %p104
      %s107 = sadd.s32 %s106, 1
      %p110 = scmp.eq.s32.totalorder %s23, 1
      %p111 = scmp.ne.s32.totalorder %s106, %s108
      %p112 = scmp.eq.s32.totalorder %s23, 0
      %p113 = por %p111, %p112
      %p114 = scmp.ne.s32.totalorder %s106, %s108
      %p115 = scmp.eq.s32.totalorder %s28, 1
      %p116 = por %p114, %p115
      %p117 = scmp.ne.s32.totalorder %s108, %s109
      %p118 = scmp.eq.s32.totalorder %s28, 0
      %p119 = por %p117, %p118
      %p120 = scmp.ne.s32.totalorder %s108, %s109
      %p121 = scmp.eq.s32.totalorder %s29, 1
      %p122 = por %p120, %p121
      %p124 = scmp.ne.s32.totalorder %s109, %s123
      %p125 = scmp.eq.s32.totalorder %s29, 0
      %p126 = por %p124, %p125
      %s128 = sadd.s32 %s127, 1
      %p131 = scmp.eq.s32.totalorder %s23, 1
      %p132 = scmp.ne.s32.totalorder %s127, %s129
      %p133 = scmp.eq.s32.totalorder %s23, 0
      %p134 = por %p132, %p133
      %p135 = scmp.ne.s32.totalorder %s127, %s129
      %p136 = scmp.eq.s32.totalorder %s28, 1
      %p137 = por %p135, %p136
      %p138 = scmp.ne.s32.totalorder %s129, %s130
      %p139 = scmp.eq.s32.totalorder %s28, 0
      %p140 = por %p138, %p139
      %p141 = scmp.ne.s32.totalorder %s129, %s130
      %p142 = scmp.eq.s32.totalorder %s29, 1
      %p143 = por %p141, %p142
      %p145 = scmp.ne.s32.totalorder %s130, %s144
      %p146 = scmp.eq.s32.totalorder %s29, 0
      %p147 = por %p145, %p146
      %s149 = sadd.s32 %s148, 1
      %p152 = scmp.eq.s32.totalorder %s23, 1
      %p153 = scmp.ne.s32.totalorder %s148, %s150
      %p154 = scmp.eq.s32.totalorder %s23, 0
      %p155 = por %p153, %p154
      %p156 = scmp.ne.s32.totalorder %s148, %s150
      %p157 = scmp.eq.s32.totalorder %s28, 1
      %p158 = por %p156, %p157
      %p159 = scmp.ne.s32.totalorder %s150, %s151
      %p160 = scmp.eq.s32.totalorder %s28, 0
      %p161 = por %p159, %p160
      %p162 = scmp.ne.s32.totalorder %s150, %s151
      %p163 = scmp.eq.s32.totalorder %s29, 1
      %p164 = por %p162, %p163
      %p166 = scmp.ne.s32.totalorder %s151, %s165
      %p167 = scmp.eq.s32.totalorder %s29, 0
      %p168 = por %p166, %p167
      %s170 = sadd.s32 %s169, 1
      %p173 = scmp.eq.s32.totalorder %s23, 1
      %p174 = scmp.ne.s32.totalorder %s169, %s171
      %p175 = scmp.eq.s32.totalorder %s23, 0
      %p176 = por %p174, %p175
      %p177 = scmp.ne.s32.totalorder %s169, %s171
      %p178 = scmp.eq.s32.totalorder %s28, 1
      %p179 = por %p177, %p178
      %p180 = scmp.ne.s32.totalorder %s171, %s172
      %p181 = scmp.eq.s32.totalorder %s28, 0
      %p182 = por %p180, %p181
      %p183 = scmp.ne.s32.totalorder %s171, %s172
      %p184 = scmp.eq.s32.totalorder %s29, 1
      %p185 = por %p183, %p184
      %p187 = scmp.ne.s32.totalorder %s172, %s186
      %p188 = scmp.eq.s32.totalorder %s29, 0
      %p189 = por %p187, %p188
      %s190 = ssub.s32 %s30, %s49
      %s191 = ssub.s32 %s31, %s45
      %s192 = sor.u32 %s190, %s191
      %p193 = scmp.eq.s32.totalorder %s192, 0
      %s195 = sadd.s32 %s194, 1
      %s196 = scalar_select %p193, %s194, %s195
      %p199 = pneg %p193
      %p200 = scmp.eq.s32.totalorder %s23, 1
      %p201 = por %p199, %p200
      %p202 = scmp.ne.s32.totalorder %s194, %s197
      %p203 = scmp.eq.s32.totalorder %s23, 0
      %p204 = por %p202, %p203
      %p205 = scmp.ne.s32.totalorder %s194, %s197
      %p206 = scmp.eq.s32.totalorder %s28, 1
      %p207 = por %p205, %p206
      %p208 = scmp.ne.s32.totalorder %s197, %s198
      %p209 = scmp.eq.s32.totalorder %s28, 0
      %p210 = por %p208, %p209
      %p211 = scmp.ne.s32.totalorder %s197, %s198
      %p212 = scmp.eq.s32.totalorder %s29, 1
      %p213 = por %p211, %p212
      %p215 = scmp.ne.s32.totalorder %s198, %s214
      %p216 = scmp.eq.s32.totalorder %s29, 0
      %p217 = por %p215, %p216
      %p218 = scmp.le.s32.totalorder 1, %s23
      %p219 = scmp.lt.s32.totalorder %s23, 3
      %p220 = pnand %p218, %p219
      %p221 = pneg %p220
      // Predicated region
      $region9: #{tpu_custom_call.1} parent=5 // pred_check
        _
      $region10: #{tpu_custom_call.1} parent=5 // pred_check_branch
        %223 = sbr.rel (%p220) target = $region12
      $region11: #{tpu_custom_call.1} parent=5 // pred_region
        %s224 = ssub.s32 %s23, 1
        // Predicated region
        $region13: #{tpu_custom_call.1} parent=11 // pred_check
          %p225 = pneg %p119
        $region14: #{tpu_custom_call.1} parent=11 // pred_check_branch
          %227 = sbr.rel (%p225) target = $region16
        $region15: #{tpu_custom_call.1} parent=11 // pred_region
          %s229 = ssub.s32 512, 512
          %230 = vsyncadd [#allocation10], %s229
          %s231 = sshll.u32 [#allocation11], 4
          %s232 = int_to_ptr.vmem [resolvable:$true] %s231
          %237 = dma.hbm_to_vmem [thread:$0]  %s2, 512, %s232, [#allocation10], 128, 128, 8
        $region16: #{tpu_custom_call.1} parent=11 // pred_fallthru
          _
        // Predicated region
        $region17: #{tpu_custom_call.1} parent=11 // pred_check
          %p238 = pneg %p140
        $region18: #{tpu_custom_call.1} parent=11 // pred_check_branch
          %240 = sbr.rel (%p238) target = $region20
        $region19: #{tpu_custom_call.1} parent=11 // pred_region
          %s242 = ssub.s32 512, 512
          %243 = vsyncadd [#allocation13], %s242
          %s244 = sshll.u32 [#allocation12], 4
          %s245 = int_to_ptr.vmem [resolvable:$true] %s244
          %250 = dma.hbm_to_vmem [thread:$0]  %s3, 512, %s245, [#allocation13], 128, 128, 8
        $region20: #{tpu_custom_call.1} parent=11 // pred_fallthru
          _
        // Predicated region
        $region21: #{tpu_custom_call.1} parent=11 // pred_check
          %p251 = pneg %p161
        $region22: #{tpu_custom_call.1} parent=11 // pred_check_branch
          %253 = sbr.rel (%p251) target = $region24
        $region23: #{tpu_custom_call.1} parent=11 // pred_region
          %s255 = ssub.s32 512, 512
          %256 = vsyncadd [#allocation13], %s255
          %s257 = sshll.u32 [#allocation14], 4
          %s258 = int_to_ptr.vmem [resolvable:$true] %s257
          %263 = dma.hbm_to_vmem [thread:$0]  %s4, 512, %s258, [#allocation13], 128, 128, 8
        $region24: #{tpu_custom_call.1} parent=11 // pred_fallthru
          _
        // Predicated region
        $region25: #{tpu_custom_call.1} parent=11 // pred_check
          %p264 = pneg %p182
        $region26: #{tpu_custom_call.1} parent=11 // pred_check_branch
          %266 = sbr.rel (%p264) target = $region28
        $region27: #{tpu_custom_call.1} parent=11 // pred_region
          %s268 = ssub.s32 16, 16
          %269 = vsyncadd [#allocation16], %s268
          %s271 = sshll.u32 [#allocation15], 4
          %s272 = int_to_ptr.vmem [resolvable:$true] %s271
          %274 = dma.hbm_to_vmem [thread:$0]  %s5, 16, %s272, [#allocation16]
        $region28: #{tpu_custom_call.1} parent=11 // pred_fallthru
          _
      $region12: #{tpu_custom_call.1} parent=5 // pred_fallthru
        _
      %p275 = scmp.lt.s32.totalorder %s23, 2
      // Predicated region
      $region29: #{tpu_custom_call.1} parent=5 // pred_check
        %p276 = pneg %p275
      $region30: #{tpu_custom_call.1} parent=5 // pred_check_branch
        %278 = sbr.rel (%p276) target = $region32
      $region31: #{tpu_custom_call.1} parent=5 // pred_region
        // Predicated region
        $region33: #{tpu_custom_call.1} parent=31 // pred_check
          %p279 = pneg %p64
        $region34: #{tpu_custom_call.1} parent=31 // pred_check_branch
          %281 = sbr.rel (%p279) target = $region36
        $region35: #{tpu_custom_call.1} parent=31 // pred_region
          %s282 = sand.u32 %s54, 1
          %s283 = scalar_lea.sflag [#allocation7], %s282
          %s284 = sand.u32 %s54, 1
          %s285 = smul.addr %s284, 8
          %s286 = scalar_lea.vmem [#allocation6], %s285
          %s288 = ssub.s32 128, 128
          %289 = vsyncadd %s283, %s288
          %s290 = sadd.s32 %s31, %s30
          %s291 = smul.addr %s290, 128
          %s292 = scalar_lea.hbm %s0, %s291
          %s294 = sshll.u32 %s286, 4
          %s295 = int_to_ptr.vmem [resolvable:$true] %s294
          %297 = dma.hbm_to_vmem [thread:$0]  %s292, 128, %s295, %s283
        $region36: #{tpu_custom_call.1} parent=31 // pred_fallthru
          _
        // Predicated region
        $region37: #{tpu_custom_call.1} parent=31 // pred_check
          %p298 = pneg %p92
        $region38: #{tpu_custom_call.1} parent=31 // pred_check_branch
          %300 = sbr.rel (%p298) target = $region40
        $region39: #{tpu_custom_call.1} parent=31 // pred_region
          %s301 = sand.u32 %s23, 1
          %s302 = scalar_lea.sflag [#allocation10], %s301
          %s303 = sand.u32 %s82, 1
          %s304 = smul.addr %s303, 8
          %s305 = scalar_lea.vmem [#allocation9], %s304
          %s307 = ssub.s32 128, 128
          %308 = vsyncadd %s302, %s307
          %s309 = sadd.s32 %s32, %s30
          %s310 = smul.addr %s309, 128
          %s311 = scalar_lea.hbm %s1, %s310
          %s313 = sshll.u32 %s305, 4
          %s314 = int_to_ptr.vmem [resolvable:$true] %s313
          %316 = dma.hbm_to_vmem [thread:$0]  %s311, 128, %s314, %s302
        $region40: #{tpu_custom_call.1} parent=31 // pred_fallthru
          _
      $region32: #{tpu_custom_call.1} parent=5 // pred_fallthru
        _
      %p317 = scmp.le.s32.totalorder 1, %s23
      %p318 = scmp.lt.s32.totalorder %s23, 3
      %p319 = pnand %p317, %p318
      %p320 = pneg %p319
      // Predicated region
      $region41: #{tpu_custom_call.1} parent=5 // pred_check
        _
      $region42: #{tpu_custom_call.1} parent=5 // pred_check_branch
        %322 = sbr.rel (%p319) target = $region44
      $region43: #{tpu_custom_call.1} parent=5 // pred_region
        %s323 = ssub.s32 %s23, 1
        %s324 = sand.u32 %s57, 1
        %s325 = scalar_lea.sflag [#allocation7], %s324
        %s326 = sand.u32 %s57, 1
        %s327 = smul.addr %s326, 8
        %s328 = scalar_lea.vmem [#allocation6], %s327
        // Predicated region
        $region45: #{tpu_custom_call.1} parent=43 // pred_check
          %p329 = pneg %p70
        $region46: #{tpu_custom_call.1} parent=43 // pred_check_branch
          %331 = sbr.rel (%p329) target = $region48
        $region47: #{tpu_custom_call.1} parent=43 // pred_region
          %332 = dma.done %s325, 128
        $region48: #{tpu_custom_call.1} parent=43 // pred_fallthru
          _
        %s333 = sand.u32 %s28, 1
        %s334 = scalar_lea.sflag [#allocation10], %s333
        %s335 = sand.u32 %s85, 1
        %s336 = smul.addr %s335, 8
        %s337 = scalar_lea.vmem [#allocation9], %s336
        // Predicated region
        $region49: #{tpu_custom_call.1} parent=43 // pred_check
          %p338 = pneg %p98
        $region50: #{tpu_custom_call.1} parent=43 // pred_check_branch
          %340 = sbr.rel (%p338) target = $region52
        $region51: #{tpu_custom_call.1} parent=43 // pred_region
          %341 = dma.done %s334, 128
        $region52: #{tpu_custom_call.1} parent=43 // pred_fallthru
          _
        // Predicated region
        $region53: #{tpu_custom_call.1} parent=43 // pred_check
          %p342 = pneg %p119
        $region54: #{tpu_custom_call.1} parent=43 // pred_check_branch
          %344 = sbr.rel (%p342) target = $region56
        $region55: #{tpu_custom_call.1} parent=43 // pred_region
          %345 = dma.done [#allocation10], 512
        $region56: #{tpu_custom_call.1} parent=43 // pred_fallthru
          _
        // Predicated region
        $region57: #{tpu_custom_call.1} parent=43 // pred_check
          %p346 = pneg %p140
        $region58: #{tpu_custom_call.1} parent=43 // pred_check_branch
          %348 = sbr.rel (%p346) target = $region60
        $region59: #{tpu_custom_call.1} parent=43 // pred_region
          %349 = dma.done [#allocation13], 512
        $region60: #{tpu_custom_call.1} parent=43 // pred_fallthru
          _
        // Predicated region
        $region61: #{tpu_custom_call.1} parent=43 // pred_check
          %p350 = pneg %p161
        $region62: #{tpu_custom_call.1} parent=43 // pred_check_branch
          %352 = sbr.rel (%p350) target = $region64
        $region63: #{tpu_custom_call.1} parent=43 // pred_region
          %353 = dma.done [#allocation13], 512
        $region64: #{tpu_custom_call.1} parent=43 // pred_fallthru
          _
        // Predicated region
        $region65: #{tpu_custom_call.1} parent=43 // pred_check
          %p354 = pneg %p182
        $region66: #{tpu_custom_call.1} parent=43 // pred_check_branch
          %356 = sbr.rel (%p354) target = $region68
        $region67: #{tpu_custom_call.1} parent=43 // pred_region
          %357 = dma.done [#allocation16], 16
        $region68: #{tpu_custom_call.1} parent=43 // pred_fallthru
          _
        %s358 = sand.u32 %s57, 1
        %s359 = scalar_lea.sflag [#allocation7], %s358
        %s360 = sand.u32 %s57, 1
        %s361 = smul.addr %s360, 8
        %s362 = scalar_lea.vmem [#allocation6], %s361
        %p363 = pneg %p70
        %p364 = pneg %p67
        %s365 = sand.u32 %s28, 1
        %s366 = scalar_lea.sflag [#allocation10], %s365
        %s367 = sand.u32 %s85, 1
        %s368 = smul.addr %s367, 8
        %s369 = scalar_lea.vmem [#allocation9], %s368
        %p370 = pneg %p98
        %p371 = pneg %p95
        %p372 = pneg %p119
        %p373 = pneg %p116
        %p374 = pneg %p140
        %p375 = pneg %p137
        %p376 = pneg %p161
        %p377 = pneg %p158
        %p378 = pneg %p182
        %p379 = pneg %p179
        %p380 = pneg %p210
        %p381 = pneg %p207
        %s382 = sand.u32 %s197, 1
        %s383 = scalar_lea.sflag [#allocation8], %s382
        %s384 = sand.u32 %s197, 1
        %s385 = smul.addr %s384, 8
        %s386 = scalar_lea.vmem [#allocation17], %s385
        %p387 = scmp.eq.s32.totalorder %s35, 0
        // Predicated region
        $region69: #{tpu_custom_call.1} parent=43 // pred_check
          %p388 = pneg %p387
        $region70: #{tpu_custom_call.1} parent=43 // pred_check_branch
          %390 = sbr.rel (%p388) target = $region72
        $region71: #{tpu_custom_call.1} parent=43 // pred_region
          %v391 = vld [vmem:[%s328] sm:$0xff]
          %v392 = vld [vmem:[#allocation11] sm:$0xff]
          %v393 = vld [vmem:[#allocation11 + $0x8] sm:$0xff]
          %v394 = vld [vmem:[#allocation11 + $0x10] sm:$0xff]
          %v395 = vld [vmem:[#allocation11 + $0x18] sm:$0xff]
          %vm396 = vcmask 261120
          %v398 = vsel %vm396, %v391, 0
          %400 = vmatprep.subr.mxu0 0.0
          %401 = vmatpush1.msra.mxu0 %v392
          %402 = vmatprep.subr.mxu0 0.0
          %403 = vmatpush1.msra.mxu0 %v393
          %404 = vmatprep.subr.mxu0 0.0
          %405 = vmatpush1.msra.mxu0 %v394
          %406 = vmatprep.subr.mxu0 0.0
          %407 = vmatpush1.msra.mxu0 %v395
          %408 = vmatprep.subr.mxu0 0.0
          %409 = vmatpush1.msra.mxu0 0.0
          %410 = vmatprep.subr.mxu0 0.0
          %411 = vmatpush1.msra.mxu0 0.0
          %412 = vmatprep.subr.mxu0 0.0
          %413 = vmatpush1.msra.mxu0 0.0
          %414 = vmatprep.subr.mxu0 0.0
          %415 = vmatpush1.msra.mxu0 0.0
          %416 = vmatprep.subr.mxu0 0.0
          %417 = vmatpush1.msra.mxu0 0.0
          %418 = vmatprep.subr.mxu0 0.0
          %419 = vmatpush1.msra.mxu0 0.0
          %420 = vmatprep.subr.mxu0 0.0
          %421 = vmatpush1.msra.mxu0 0.0
          %422 = vmatprep.subr.mxu0 0.0
          %423 = vmatpush1.msra.mxu0 0.0
          %424 = vmatprep.subr.mxu0 0.0
          %425 = vmatpush1.msra.mxu0 0.0
          %426 = vmatprep.subr.mxu0 0.0
          %427 = vmatpush1.msra.mxu0 0.0
          %428 = vmatprep.subr.mxu0 0.0
          %429 = vmatpush1.msra.mxu0 0.0
          %430 = vmatprep.subr.mxu0 0.0
          %431 = vmatpush1.msra.mxu0 0.0
          %432 = vmatprep.subr.mxu0 0.0
          %433 = vmatpush1.msra.mxu0 0.0
          %434 = vmatprep.subr.mxu0 0.0
          %435 = vmatpush1.msra.mxu0 0.0
          %436 = vmatprep.subr.mxu0 0.0
          %437 = vmatpush1.msra.mxu0 0.0
          %438 = vmatprep.subr.mxu0 0.0
          %439 = vmatpush1.msra.mxu0 0.0
          %440 = vmatprep.subr.mxu0 0.0
          %441 = vmatpush1.msra.mxu0 0.0
          %442 = vmatprep.subr.mxu0 0.0
          %443 = vmatpush1.msra.mxu0 0.0
          %444 = vmatprep.subr.mxu0 0.0
          %445 = vmatpush1.msra.mxu0 0.0
          %446 = vmatprep.subr.mxu0 0.0
          %447 = vmatpush1.msra.mxu0 0.0
          %448 = vmatprep.subr.mxu0 0.0
          %449 = vmatpush1.msra.mxu0 0.0
          %450 = vmatprep.subr.mxu0 0.0
          %451 = vmatpush1.msra.mxu0 0.0
          %452 = vmatprep.subr.mxu0 0.0
          %453 = vmatpush1.msra.mxu0 0.0
          %454 = vmatprep.subr.mxu0 0.0
          %455 = vmatpush1.msra.mxu0 0.0
          %456 = vmatprep.subr.mxu0 0.0
          %457 = vmatpush1.msra.mxu0 0.0
          %458 = vmatprep.subr.mxu0 0.0
          %459 = vmatpush1.msra.mxu0 0.0
          %460 = vmatprep.subr.mxu0 0.0
          %461 = vmatpush1.msra.mxu0 0.0
          %462 = vmatprep.subr.mxu0 0.0
          %463 = vmatpush1.msra.mxu0 0.0
          %464 = vmatprep.mubr.f32.mxu0 0.0
          %465 = vmatmul.mubr.f32.gmra.mrb[0].mxu0 %v398
          %v466 = vpop.f32.mrb[0].mxu0
          %v467 = vadd.f32 0.0, %v466
          %v468 = vpop.f32.mrb[0].mxu0
          %469 = vdwg.mxu0
          %470 = vst.msk [vmem:[#allocation2] sm:$0xff] %vm396, %v467
          %vm471 = vcmask 31744
          %472 = vst.msk [vmem:[#allocation3] sm:$0xff] %vm471, -1e+30
          %473 = vst.msk [vmem:[#allocation4] sm:$0xff] %vm471, 0.0
          %474 = vst.msk [vmem:[#allocation5] sm:$0xff] %vm396, 0.0
        $region72: #{tpu_custom_call.1} parent=43 // pred_fallthru
          _
        %s475 = smul.u32 %s34, 8
        %s476 = sadd.s32 %s475, 7
        %s477 = smul.u32 %s35, 8
        %p478 = scmp.le.s32.totalorder %s477, %s476
        // Predicated region
        $region73: #{tpu_custom_call.1} parent=43 // pred_check
          %p479 = pneg %p478
        $region74: #{tpu_custom_call.1} parent=43 // pred_check_branch
          %481 = sbr.rel (%p479) target = $region76
        $region75: #{tpu_custom_call.1} parent=43 // pred_region
          %v482 = vld [vmem:[%s337] sm:$0xff]
          %v483 = vld [vmem:[#allocation12] sm:$0xff]
          %v484 = vld [vmem:[#allocation12 + $0x8] sm:$0xff]
          %v485 = vld [vmem:[#allocation12 + $0x10] sm:$0xff]
          %v486 = vld [vmem:[#allocation12 + $0x18] sm:$0xff]
          %vm487 = vcmask 261120
          %v489 = vsel %vm487, %v482, 0
          %491 = vmatprep.subr.mxu0 0.0
          %492 = vmatpush1.msra.mxu0 %v483
          %493 = vmatprep.subr.mxu0 0.0
          %494 = vmatpush1.msra.mxu0 %v484
          %495 = vmatprep.subr.mxu0 0.0
          %496 = vmatpush1.msra.mxu0 %v485
          %497 = vmatprep.subr.mxu0 0.0
          %498 = vmatpush1.msra.mxu0 %v486
          %499 = vmatprep.subr.mxu0 0.0
          %500 = vmatpush1.msra.mxu0 0.0
          %501 = vmatprep.subr.mxu0 0.0
          %502 = vmatpush1.msra.mxu0 0.0
          %503 = vmatprep.subr.mxu0 0.0
          %504 = vmatpush1.msra.mxu0 0.0
          %505 = vmatprep.subr.mxu0 0.0
          %506 = vmatpush1.msra.mxu0 0.0
          %507 = vmatprep.subr.mxu0 0.0
          %508 = vmatpush1.msra.mxu0 0.0
          %509 = vmatprep.subr.mxu0 0.0
          %510 = vmatpush1.msra.mxu0 0.0
          %511 = vmatprep.subr.mxu0 0.0
          %512 = vmatpush1.msra.mxu0 0.0
          %513 = vmatprep.subr.mxu0 0.0
          %514 = vmatpush1.msra.mxu0 0.0
          %515 = vmatprep.subr.mxu0 0.0
          %516 = vmatpush1.msra.mxu0 0.0
          %517 = vmatprep.subr.mxu0 0.0
          %518 = vmatpush1.msra.mxu0 0.0
          %519 = vmatprep.subr.mxu0 0.0
          %520 = vmatpush1.msra.mxu0 0.0
          %521 = vmatprep.subr.mxu0 0.0
          %522 = vmatpush1.msra.mxu0 0.0
          %523 = vmatprep.subr.mxu0 0.0
          %524 = vmatpush1.msra.mxu0 0.0
          %525 = vmatprep.subr.mxu0 0.0
          %526 = vmatpush1.msra.mxu0 0.0
          %527 = vmatprep.subr.mxu0 0.0
          %528 = vmatpush1.msra.mxu0 0.0
          %529 = vmatprep.subr.mxu0 0.0
          %530 = vmatpush1.msra.mxu0 0.0
          %531 = vmatprep.subr.mxu0 0.0
          %532 = vmatpush1.msra.mxu0 0.0
          %533 = vmatprep.subr.mxu0 0.0
          %534 = vmatpush1.msra.mxu0 0.0
          %535 = vmatprep.subr.mxu0 0.0
          %536 = vmatpush1.msra.mxu0 0.0
          %537 = vmatprep.subr.mxu0 0.0
          %538 = vmatpush1.msra.mxu0 0.0
          %539 = vmatprep.subr.mxu0 0.0
          %540 = vmatpush1.msra.mxu0 0.0
          %541 = vmatprep.subr.mxu0 0.0
          %542 = vmatpush1.msra.mxu0 0.0
          %543 = vmatprep.subr.mxu0 0.0
          %544 = vmatpush1.msra.mxu0 0.0
          %545 = vmatprep.subr.mxu0 0.0
          %546 = vmatpush1.msra.mxu0 0.0
          %547 = vmatprep.subr.mxu0 0.0
          %548 = vmatpush1.msra.mxu0 0.0
          %549 = vmatprep.subr.mxu0 0.0
          %550 = vmatpush1.msra.mxu0 0.0
          %551 = vmatprep.subr.mxu0 0.0
          %552 = vmatpush1.msra.mxu0 0.0
          %553 = vmatprep.subr.mxu0 0.0
          %554 = vmatpush1.msra.mxu0 0.0
          %555 = vmatprep.mubr.f32.mxu0 0.0
          %556 = vmatmul.mubr.f32.gmra.mrb[0].mxu0 %v489
          %v557 = vpop.f32.mrb[0].mxu0
          %v558 = vadd.f32 0.0, %v557
          %v559 = vpop.f32.mrb[0].mxu0
          %560 = vdwg.mxu0
          %v561 = vlaneseq
          %v562 = vshrl.u32 %v561, 7
          %v563 = vstv %s475
          %v564 = vadd.s32 %v563, %v562
          %v565 = vlaneseq
          %v566 = vand.u32 %v565, 127
          %v567 = vstv %s477
          %v568 = vadd.s32 %v567, %v566
          %vm569 = vcmp.le.s32.totalorder %v568, %v564
          %v570 = vld [vmem:[#allocation2] sm:$0xff]
          %vm571 = vcmask 64512
          %v573 = vsel %vm571, %v570, 0
          %v576 = vsel %vm571, %v558, 0
          %578 = vmatprep.subr.mxu0 0.0
          %579 = vmatpush1.xpose.msra.mxu0 %v576
          %580 = vmatprep.subr.mxu0 0.0
          %581 = vmatpush1.xpose.msra.mxu0 0.0
          %582 = vmatprep.subr.mxu0 0.0
          %583 = vmatpush1.xpose.msra.mxu0 0.0
          %584 = vmatprep.subr.mxu0 0.0
          %585 = vmatpush1.xpose.msra.mxu0 0.0
          %586 = vmatprep.subr.mxu0 0.0
          %587 = vmatpush1.xpose.msra.mxu0 0.0
          %588 = vmatprep.subr.mxu0 0.0
          %589 = vmatpush1.xpose.msra.mxu0 0.0
          %590 = vmatprep.subr.mxu0 0.0
          %591 = vmatpush1.xpose.msra.mxu0 0.0
          %592 = vmatprep.subr.mxu0 0.0
          %593 = vmatpush1.xpose.msra.mxu0 0.0
          %594 = vmatprep.subr.mxu0 0.0
          %595 = vmatpush1.xpose.msra.mxu0 0.0
          %596 = vmatprep.subr.mxu0 0.0
          %597 = vmatpush1.xpose.msra.mxu0 0.0
          %598 = vmatprep.subr.mxu0 0.0
          %599 = vmatpush1.xpose.msra.mxu0 0.0
          %600 = vmatprep.subr.mxu0 0.0
          %601 = vmatpush1.xpose.msra.mxu0 0.0
          %602 = vmatprep.subr.mxu0 0.0
          %603 = vmatpush1.xpose.msra.mxu0 0.0
          %604 = vmatprep.subr.mxu0 0.0
          %605 = vmatpush1.xpose.msra.mxu0 0.0
          %606 = vmatprep.subr.mxu0 0.0
          %607 = vmatpush1.xpose.msra.mxu0 0.0
          %608 = vmatprep.subr.mxu0 0.0
          %609 = vmatpush1.xpose.msra.mxu0 0.0
          %610 = vmatprep.subr.mxu0 0.0
          %611 = vmatpush1.xpose.msra.mxu0 0.0
          %612 = vmatprep.subr.mxu0 0.0
          %613 = vmatpush1.xpose.msra.mxu0 0.0
          %614 = vmatprep.subr.mxu0 0.0
          %615 = vmatpush1.xpose.msra.mxu0 0.0
          %616 = vmatprep.subr.mxu0 0.0
          %617 = vmatpush1.xpose.msra.mxu0 0.0
          %618 = vmatprep.subr.mxu0 0.0
          %619 = vmatpush1.xpose.msra.mxu0 0.0
          %620 = vmatprep.subr.mxu0 0.0
          %621 = vmatpush1.xpose.msra.mxu0 0.0
          %622 = vmatprep.subr.mxu0 0.0
          %623 = vmatpush1.xpose.msra.mxu0 0.0
          %624 = vmatprep.subr.mxu0 0.0
          %625 = vmatpush1.xpose.msra.mxu0 0.0
          %626 = vmatprep.subr.mxu0 0.0
          %627 = vmatpush1.xpose.msra.mxu0 0.0
          %628 = vmatprep.subr.mxu0 0.0
          %629 = vmatpush1.xpose.msra.mxu0 0.0
          %630 = vmatprep.subr.mxu0 0.0
          %631 = vmatpush1.xpose.msra.mxu0 0.0
          %632 = vmatprep.subr.mxu0 0.0
          %633 = vmatpush1.xpose.msra.mxu0 0.0
          %634 = vmatprep.subr.mxu0 0.0
          %635 = vmatpush1.xpose.msra.mxu0 0.0
          %636 = vmatprep.subr.mxu0 0.0
          %637 = vmatpush1.xpose.msra.mxu0 0.0
          %638 = vmatprep.subr.mxu0 0.0
          %639 = vmatpush1.xpose.msra.mxu0 0.0
          %640 = vmatprep.subr.mxu0 0.0
          %641 = vmatpush1.xpose.msra.mxu0 0.0
          %642 = vmatprep.mubr.f32.mxu0 0.0
          %643 = vmatmul.mubr.f32.gmra.mrb[0].mxu0 %v573
          %v644 = vpop.f32.mrb[0].mxu0
          %v645 = vadd.f32 0.0, %v644
          %v646 = vpop.f32.mrb[0].mxu0
          %647 = vdwg.mxu0
          %v648 = vmul.f32 %v645, 0.35355338
          %v649 = vsel %vm569, %v648, -1e+30
          %v650 = vld [vmem:[#allocation3] sm:$0xff]
          %v651 = vsel %vm571, %v649, -inf
          %652 = vmax.xlane.f32.xlu0 %v651
          %v653 = vpop.xlane.xlu0 %652
          %v654 = vmax.f32 %v650, %v653
          %v655 = vsub.f32 %v650, %v654
          %v656 = vmul.f32 %v655, 1.442695
          %v657 = vpow.pop %v656
          %659 = vset.pattern.permute.xlu0 0
          %660 = vperm.xlu0 %659, %v654
          %v661 = vpop.permute.xlu0 %660
          %v663 = vsub.f32 %v649, %v661
          %v664 = vmul.f32 %v663, 1.442695
          %v665 = vpow.pop %v664
          %v666 = vld [vmem:[#allocation4] sm:$0xff]
          %v667 = vmul.f32 %v657, %v666
          %v668 = vsel %vm571, %v665, 0.0
          %669 = vadd.xlane.f32.xlu0 %v668
          %v670 = vpop.xlane.xlu0 %669
          %v671 = vadd.f32 %v667, %v670
          %vm672 = vcmask 7168
          %673 = vst.msk [vmem:[#allocation4] sm:$0xff] %vm672, %v671
          %v674 = vld [vmem:[#allocation5] sm:$0xff]
          %676 = vset.pattern.permute.xlu0 0
          %677 = vperm.xlu0 %676, %v657
          %v678 = vpop.permute.xlu0 %677
          %v680 = vmul.f32 %v678, %v674
          %681 = vrot.lane.b32.xlu0 %v558, 96
          %v682 = vpop.permute.xlu0 %681
          %v685 = vsel %vm571, %v665, 0
          %687 = vmatprep.subr.mxu0 0.0
          %688 = vmatpush1.msra.mxu0 %v682
          %689 = vmatprep.subr.mxu0 0.0
          %690 = vmatpush1.msra.mxu0 0.0
          %691 = vmatprep.subr.mxu0 0.0
          %692 = vmatpush1.msra.mxu0 0.0
          %693 = vmatprep.subr.mxu0 0.0
          %694 = vmatpush1.msra.mxu0 0.0
          %695 = vmatprep.subr.mxu0 0.0
          %696 = vmatpush1.msra.mxu0 0.0
          %697 = vmatprep.subr.mxu0 0.0
          %698 = vmatpush1.msra.mxu0 0.0
          %699 = vmatprep.subr.mxu0 0.0
          %700 = vmatpush1.msra.mxu0 0.0
          %701 = vmatprep.subr.mxu0 0.0
          %702 = vmatpush1.msra.mxu0 0.0
          %703 = vmatprep.subr.mxu0 0.0
          %704 = vmatpush1.msra.mxu0 0.0
          %705 = vmatprep.subr.mxu0 0.0
          %706 = vmatpush1.msra.mxu0 0.0
          %707 = vmatprep.subr.mxu0 0.0
          %708 = vmatpush1.msra.mxu0 0.0
          %709 = vmatprep.subr.mxu0 0.0
          %710 = vmatpush1.msra.mxu0 0.0
          %711 = vmatprep.subr.mxu0 0.0
          %712 = vmatpush1.msra.mxu0 0.0
          %713 = vmatprep.subr.mxu0 0.0
          %714 = vmatpush1.msra.mxu0 0.0
          %715 = vmatprep.subr.mxu0 0.0
          %716 = vmatpush1.msra.mxu0 0.0
          %717 = vmatprep.subr.mxu0 0.0
          %718 = vmatpush1.msra.mxu0 0.0
          %719 = vmatprep.subr.mxu0 0.0
          %720 = vmatpush1.msra.mxu0 0.0
          %721 = vmatprep.subr.mxu0 0.0
          %722 = vmatpush1.msra.mxu0 0.0
          %723 = vmatprep.subr.mxu0 0.0
          %724 = vmatpush1.msra.mxu0 0.0
          %725 = vmatprep.subr.mxu0 0.0
          %726 = vmatpush1.msra.mxu0 0.0
          %727 = vmatprep.subr.mxu0 0.0
          %728 = vmatpush1.msra.mxu0 0.0
          %729 = vmatprep.subr.mxu0 0.0
          %730 = vmatpush1.msra.mxu0 0.0
          %731 = vmatprep.subr.mxu0 0.0
          %732 = vmatpush1.msra.mxu0 0.0
          %733 = vmatprep.subr.mxu0 0.0
          %734 = vmatpush1.msra.mxu0 0.0
          %735 = vmatprep.subr.mxu0 0.0
          %736 = vmatpush1.msra.mxu0 0.0
          %737 = vmatprep.subr.mxu0 0.0
          %738 = vmatpush1.msra.mxu0 0.0
          %739 = vmatprep.subr.mxu0 0.0
          %740 = vmatpush1.msra.mxu0 0.0
          %741 = vmatprep.subr.mxu0 0.0
          %742 = vmatpush1.msra.mxu0 0.0
          %743 = vmatprep.subr.mxu0 0.0
          %744 = vmatpush1.msra.mxu0 0.0
          %745 = vmatprep.subr.mxu0 0.0
          %746 = vmatpush1.msra.mxu0 0.0
          %747 = vmatprep.subr.mxu0 0.0
          %748 = vmatpush1.msra.mxu0 0.0
          %749 = vmatprep.subr.mxu0 0.0
          %750 = vmatpush1.msra.mxu0 0.0
          %751 = vmatprep.mubr.f32.mxu0 0.0
          %752 = vmatmul.mubr.f32.gmra.mrb[0].mxu0 %v685
          %v753 = vpop.f32.mrb[0].mxu0
          %v754 = vadd.f32 0.0, %v753
          %v755 = vpop.f32.mrb[0].mxu0
          %756 = vdwg.mxu0
          %v757 = vadd.f32 %v680, %v754
          %758 = vst.msk [vmem:[#allocation5] sm:$0xff] %vm571, %v757
          %759 = vst.msk [vmem:[#allocation3] sm:$0xff] %vm672, %v654
          %v760 = vld [vmem:[#allocation2] sm:$0xff]
          %762 = vrot.lane.b32.xlu0 %v760, 120
          %v763 = vpop.permute.xlu0 %762
          %764 = vrot.lane.b32.xlu0 %v558, 120
          %v765 = vpop.permute.xlu0 %764
          %v766 = vsel %vm571, %v763, 0
          %v768 = vsel %vm571, %v765, 0
          %770 = vmatprep.subr.mxu0 0.0
          %771 = vmatpush1.xpose.msra.mxu0 %v768
          %772 = vmatprep.subr.mxu0 0.0
          %773 = vmatpush1.xpose.msra.mxu0 0.0
          %774 = vmatprep.subr.mxu0 0.0
          %775 = vmatpush1.xpose.msra.mxu0 0.0
          %776 = vmatprep.subr.mxu0 0.0
          %777 = vmatpush1.xpose.msra.mxu0 0.0
          %778 = vmatprep.subr.mxu0 0.0
          %779 = vmatpush1.xpose.msra.mxu0 0.0
          %780 = vmatprep.subr.mxu0 0.0
          %781 = vmatpush1.xpose.msra.mxu0 0.0
          %782 = vmatprep.subr.mxu0 0.0
          %783 = vmatpush1.xpose.msra.mxu0 0.0
          %784 = vmatprep.subr.mxu0 0.0
          %785 = vmatpush1.xpose.msra.mxu0 0.0
          %786 = vmatprep.subr.mxu0 0.0
          %787 = vmatpush1.xpose.msra.mxu0 0.0
          %788 = vmatprep.subr.mxu0 0.0
          %789 = vmatpush1.xpose.msra.mxu0 0.0
          %790 = vmatprep.subr.mxu0 0.0
          %791 = vmatpush1.xpose.msra.mxu0 0.0
          %792 = vmatprep.subr.mxu0 0.0
          %793 = vmatpush1.xpose.msra.mxu0 0.0
          %794 = vmatprep.subr.mxu0 0.0
          %795 = vmatpush1.xpose.msra.mxu0 0.0
          %796 = vmatprep.subr.mxu0 0.0
          %797 = vmatpush1.xpose.msra.mxu0 0.0
          %798 = vmatprep.subr.mxu0 0.0
          %799 = vmatpush1.xpose.msra.mxu0 0.0
          %800 = vmatprep.subr.mxu0 0.0
          %801 = vmatpush1.xpose.msra.mxu0 0.0
          %802 = vmatprep.subr.mxu0 0.0
          %803 = vmatpush1.xpose.msra.mxu0 0.0
          %804 = vmatprep.subr.mxu0 0.0
          %805 = vmatpush1.xpose.msra.mxu0 0.0
          %806 = vmatprep.subr.mxu0 0.0
          %807 = vmatpush1.xpose.msra.mxu0 0.0
          %808 = vmatprep.subr.mxu0 0.0
          %809 = vmatpush1.xpose.msra.mxu0 0.0
          %810 = vmatprep.subr.mxu0 0.0
          %811 = vmatpush1.xpose.msra.mxu0 0.0
          %812 = vmatprep.subr.mxu0 0.0
          %813 = vmatpush1.xpose.msra.mxu0 0.0
          %814 = vmatprep.subr.mxu0 0.0
          %815 = vmatpush1.xpose.msra.mxu0 0.0
          %816 = vmatprep.subr.mxu0 0.0
          %817 = vmatpush1.xpose.msra.mxu0 0.0
          %818 = vmatprep.subr.mxu0 0.0
          %819 = vmatpush1.xpose.msra.mxu0 0.0
          %820 = vmatprep.subr.mxu0 0.0
          %821 = vmatpush1.xpose.msra.mxu0 0.0
          %822 = vmatprep.subr.mxu0 0.0
          %823 = vmatpush1.xpose.msra.mxu0 0.0
          %824 = vmatprep.subr.mxu0 0.0
          %825 = vmatpush1.xpose.msra.mxu0 0.0
          %826 = vmatprep.subr.mxu0 0.0
          %827 = vmatpush1.xpose.msra.mxu0 0.0
          %828 = vmatprep.subr.mxu0 0.0
          %829 = vmatpush1.xpose.msra.mxu0 0.0
          %830 = vmatprep.subr.mxu0 0.0
          %831 = vmatpush1.xpose.msra.mxu0 0.0
          %832 = vmatprep.subr.mxu0 0.0
          %833 = vmatpush1.xpose.msra.mxu0 0.0
          %834 = vmatprep.mubr.f32.mxu0 0.0
          %835 = vmatmul.mubr.f32.gmra.mrb[0].mxu0 %v766
          %v836 = vpop.f32.mrb[0].mxu0
          %v837 = vadd.f32 0.0, %v836
          %v838 = vpop.f32.mrb[0].mxu0
          %839 = vdwg.mxu0
          %v840 = vmul.f32 %v837, 0.35355338
          %v841 = vsel %vm569, %v840, -1e+30
          %v842 = vld [vmem:[#allocation3] sm:$0xff]
          %v843 = vsel %vm571, %v841, -inf
          %844 = vmax.xlane.f32.xlu0 %v843
          %v845 = vpop.xlane.xlu0 %844
          %v846 = vmax.f32 %v842, %v845
          %v847 = vsub.f32 %v842, %v846
          %v848 = vmul.f32 %v847, 1.442695
          %v849 = vpow.pop %v848
          %851 = vset.pattern.permute.xlu0 1
          %852 = vperm.xlu0 %851, %v846
          %v853 = vpop.permute.xlu0 %852
          %v855 = vsub.f32 %v841, %v853
          %v856 = vmul.f32 %v855, 1.442695
          %v857 = vpow.pop %v856
          %v858 = vld [vmem:[#allocation4] sm:$0xff]
          %v859 = vmul.f32 %v849, %v858
          %v860 = vsel %vm571, %v857, 0.0
          %861 = vadd.xlane.f32.xlu0 %v860
          %v862 = vpop.xlane.xlu0 %861
          %v863 = vadd.f32 %v859, %v862
          %vm864 = vcmask 15368
          %865 = vst.msk [vmem:[#allocation4] sm:$0xff] %vm864, %v863
          %v866 = vld [vmem:[#allocation5] sm:$0xff]
          %868 = vset.pattern.permute.xlu0 1
          %869 = vperm.xlu0 %868, %v849
          %v870 = vpop.permute.xlu0 %869
          %v872 = vmul.f32 %v870, %v866
          %873 = vrot.lane.b32.xlu0 %v558, 88
          %v874 = vpop.permute.xlu0 %873
          %v877 = vsel %vm571, %v857, 0
          %879 = vmatprep.subr.mxu0 0.0
          %880 = vmatpush1.msra.mxu0 %v874
          %881 = vmatprep.subr.mxu0 0.0
          %882 = vmatpush1.msra.mxu0 0.0
          %883 = vmatprep.subr.mxu0 0.0
          %884 = vmatpush1.msra.mxu0 0.0
          %885 = vmatprep.subr.mxu0 0.0
          %886 = vmatpush1.msra.mxu0 0.0
          %887 = vmatprep.subr.mxu0 0.0
          %888 = vmatpush1.msra.mxu0 0.0
          %889 = vmatprep.subr.mxu0 0.0
          %890 = vmatpush1.msra.mxu0 0.0
          %891 = vmatprep.subr.mxu0 0.0
          %892 = vmatpush1.msra.mxu0 0.0
          %893 = vmatprep.subr.mxu0 0.0
          %894 = vmatpush1.msra.mxu0 0.0
          %895 = vmatprep.subr.mxu0 0.0
          %896 = vmatpush1.msra.mxu0 0.0
          %897 = vmatprep.subr.mxu0 0.0
          %898 = vmatpush1.msra.mxu0 0.0
          %899 = vmatprep.subr.mxu0 0.0
          %900 = vmatpush1.msra.mxu0 0.0
          %901 = vmatprep.subr.mxu0 0.0
          %902 = vmatpush1.msra.mxu0 0.0
          %903 = vmatprep.subr.mxu0 0.0
          %904 = vmatpush1.msra.mxu0 0.0
          %905 = vmatprep.subr.mxu0 0.0
          %906 = vmatpush1.msra.mxu0 0.0
          %907 = vmatprep.subr.mxu0 0.0
          %908 = vmatpush1.msra.mxu0 0.0
          %909 = vmatprep.subr.mxu0 0.0
          %910 = vmatpush1.msra.mxu0 0.0
          %911 = vmatprep.subr.mxu0 0.0
          %912 = vmatpush1.msra.mxu0 0.0
          %913 = vmatprep.subr.mxu0 0.0
          %914 = vmatpush1.msra.mxu0 0.0
          %915 = vmatprep.subr.mxu0 0.0
          %916 = vmatpush1.msra.mxu0 0.0
          %917 = vmatprep.subr.mxu0 0.0
          %918 = vmatpush1.msra.mxu0 0.0
          %919 = vmatprep.subr.mxu0 0.0
          %920 = vmatpush1.msra.mxu0 0.0
          %921 = vmatprep.subr.mxu0 0.0
          %922 = vmatpush1.msra.mxu0 0.0
          %923 = vmatprep.subr.mxu0 0.0
          %924 = vmatpush1.msra.mxu0 0.0
          %925 = vmatprep.subr.mxu0 0.0
          %926 = vmatpush1.msra.mxu0 0.0
          %927 = vmatprep.subr.mxu0 0.0
          %928 = vmatpush1.msra.mxu0 0.0
          %929 = vmatprep.subr.mxu0 0.0
          %930 = vmatpush1.msra.mxu0 0.0
          %931 = vmatprep.subr.mxu0 0.0
          %932 = vmatpush1.msra.mxu0 0.0
          %933 = vmatprep.subr.mxu0 0.0
          %934 = vmatpush1.msra.mxu0 0.0
          %935 = vmatprep.subr.mxu0 0.0
          %936 = vmatpush1.msra.mxu0 0.0
          %937 = vmatprep.subr.mxu0 0.0
          %938 = vmatpush1.msra.mxu0 0.0
          %939 = vmatprep.subr.mxu0 0.0
          %940 = vmatpush1.msra.mxu0 0.0
          %941 = vmatprep.subr.mxu0 0.0
          %942 = vmatpush1.msra.mxu0 0.0
          %943 = vmatprep.mubr.f32.mxu0 0.0
          %944 = vmatmul.mubr.f32.gmra.mrb[0].mxu0 %v877
          %v945 = vpop.f32.mrb[0].mxu0
          %v946 = vadd.f32 0.0, %v945
          %v947 = vpop.f32.mrb[0].mxu0
          %948 = vdwg.mxu0
          %950 = vrot.lane.b32.xlu0 %v946, 8
          %v951 = vpop.permute.xlu0 %950
          %v953 = vadd.f32 %v872, %v951
          %vm954 = vcmask 130112
          %955 = vst.msk [vmem:[#allocation5] sm:$0xff] %vm954, %v953
          %956 = vst.msk [vmem:[#allocation3] sm:$0xff] %vm864, %v846
          %v957 = vld [vmem:[#allocation2] sm:$0xff]
          %959 = vrot.lane.b32.xlu0 %v957, 112
          %v960 = vpop.permute.xlu0 %959
          %961 = vrot.lane.b32.xlu0 %v558, 112
          %v962 = vpop.permute.xlu0 %961
          %v963 = vsel %vm571, %v960, 0
          %v965 = vsel %vm571, %v962, 0
          %967 = vmatprep.subr.mxu0 0.0
          %968 = vmatpush1.xpose.msra.mxu0 %v965
          %969 = vmatprep.subr.mxu0 0.0
          %970 = vmatpush1.xpose.msra.mxu0 0.0
          %971 = vmatprep.subr.mxu0 0.0
          %972 = vmatpush1.xpose.msra.mxu0 0.0
          %973 = vmatprep.subr.mxu0 0.0
          %974 = vmatpush1.xpose.msra.mxu0 0.0
          %975 = vmatprep.subr.mxu0 0.0
          %976 = vmatpush1.xpose.msra.mxu0 0.0
          %977 = vmatprep.subr.mxu0 0.0
          %978 = vmatpush1.xpose.msra.mxu0 0.0
          %979 = vmatprep.subr.mxu0 0.0
          %980 = vmatpush1.xpose.msra.mxu0 0.0
          %981 = vmatprep.subr.mxu0 0.0
          %982 = vmatpush1.xpose.msra.mxu0 0.0
          %983 = vmatprep.subr.mxu0 0.0
          %984 = vmatpush1.xpose.msra.mxu0 0.0
          %985 = vmatprep.subr.mxu0 0.0
          %986 = vmatpush1.xpose.msra.mxu0 0.0
          %987 = vmatprep.subr.mxu0 0.0
          %988 = vmatpush1.xpose.msra.mxu0 0.0
          %989 = vmatprep.subr.mxu0 0.0
          %990 = vmatpush1.xpose.msra.mxu0 0.0
          %991 = vmatprep.subr.mxu0 0.0
          %992 = vmatpush1.xpose.msra.mxu0 0.0
          %993 = vmatprep.subr.mxu0 0.0
          %994 = vmatpush1.xpose.msra.mxu0 0.0
          %995 = vmatprep.subr.mxu0 0.0
          %996 = vmatpush1.xpose.msra.mxu0 0.0
          %997 = vmatprep.subr.mxu0 0.0
          %998 = vmatpush1.xpose.msra.mxu0 0.0
          %999 = vmatprep.subr.mxu0 0.0
          %1000 = vmatpush1.xpose.msra.mxu0 0.0
          %1001 = vmatprep.subr.mxu0 0.0
          %1002 = vmatpush1.xpose.msra.mxu0 0.0
          %1003 = vmatprep.subr.mxu0 0.0
          %1004 = vmatpush1.xpose.msra.mxu0 0.0
          %1005 = vmatprep.subr.mxu0 0.0
          %1006 = vmatpush1.xpose.msra.mxu0 0.0
          %1007 = vmatprep.subr.mxu0 0.0
          %1008 = vmatpush1.xpose.msra.mxu0 0.0
          %1009 = vmatprep.subr.mxu0 0.0
          %1010 = vmatpush1.xpose.msra.mxu0 0.0
          %1011 = vmatprep.subr.mxu0 0.0
          %1012 = vmatpush1.xpose.msra.mxu0 0.0
          %1013 = vmatprep.subr.mxu0 0.0
          %1014 = vmatpush1.xpose.msra.mxu0 0.0
          %1015 = vmatprep.subr.mxu0 0.0
          %1016 = vmatpush1.xpose.msra.mxu0 0.0
          %1017 = vmatprep.subr.mxu0 0.0
          %1018 = vmatpush1.xpose.msra.mxu0 0.0
          %1019 = vmatprep.subr.mxu0 0.0
          %1020 = vmatpush1.xpose.msra.mxu0 0.0
          %1021 = vmatprep.subr.mxu0 0.0
          %1022 = vmatpush1.xpose.msra.mxu0 0.0
          %1023 = vmatprep.subr.mxu0 0.0
          %1024 = vmatpush1.xpose.msra.mxu0 0.0
          %1025 = vmatprep.subr.mxu0 0.0
          %1026 = vmatpush1.xpose.msra.mxu0 0.0
          %1027 = vmatprep.subr.mxu0 0.0
          %1028 = vmatpush1.xpose.msra.mxu0 0.0
          %1029 = vmatprep.subr.mxu0 0.0
          %1030 = vmatpush1.xpose.msra.mxu0 0.0
          %1031 = vmatprep.mubr.f32.mxu0 0.0
          %1032 = vmatmul.mubr.f32.gmra.mrb[0].mxu0 %v963
          %v1033 = vpop.f32.mrb[0].mxu0
          %v1034 = vadd.f32 0.0, %v1033
          %v1035 = vpop.f32.mrb[0].mxu0
          %1036 = vdwg.mxu0
          %v1037 = vmul.f32 %v1034, 0.35355338
          %v1038 = vsel %vm569, %v1037, -1e+30
          %v1039 = vld [vmem:[#allocation3] sm:$0xff]
          %v1040 = vsel %vm571, %v1038, -inf
          %1041 = vmax.xlane.f32.xlu0 %v1040
          %v1042 = vpop.xlane.xlu0 %1041
          %v1043 = vmax.f32 %v1039, %v1042
          %v1044 = vsub.f32 %v1039, %v1043
          %v1045 = vmul.f32 %v1044, 1.442695
          %v1046 = vpow.pop %v1045
          %1048 = vset.pattern.permute.xlu0 2
          %1049 = vperm.xlu0 %1048, %v1043
          %v1050 = vpop.permute.xlu0 %1049
          %v1052 = vsub.f32 %v1038, %v1050
          %v1053 = vmul.f32 %v1052, 1.442695
          %v1054 = vpow.pop %v1053
          %v1055 = vld [vmem:[#allocation4] sm:$0xff]
          %v1056 = vmul.f32 %v1046, %v1055
          %v1057 = vsel %vm571, %v1054, 0.0
          %1058 = vadd.xlane.f32.xlu0 %v1057
          %v1059 = vpop.xlane.xlu0 %1058
          %v1060 = vadd.f32 %v1056, %v1059
          %vm1061 = vcmask 23568
          %1062 = vst.msk [vmem:[#allocation4] sm:$0xff] %vm1061, %v1060
          %v1063 = vld [vmem:[#allocation5] sm:$0xff]
          %1065 = vset.pattern.permute.xlu0 2
          %1066 = vperm.xlu0 %1065, %v1046
          %v1067 = vpop.permute.xlu0 %1066
          %v1069 = vmul.f32 %v1067, %v1063
          %1070 = vrot.lane.b32.xlu0 %v558, 80
          %v1071 = vpop.permute.xlu0 %1070
          %v1074 = vsel %vm571, %v1054, 0
          %1076 = vmatprep.subr.mxu0 0.0
          %1077 = vmatpush1.msra.mxu0 %v1071
          %1078 = vmatprep.subr.mxu0 0.0
          %1079 = vmatpush1.msra.mxu0 0.0
          %1080 = vmatprep.subr.mxu0 0.0
          %1081 = vmatpush1.msra.mxu0 0.0
          %1082 = vmatprep.subr.mxu0 0.0
          %1083 = vmatpush1.msra.mxu0 0.0
          %1084 = vmatprep.subr.mxu0 0.0
          %1085 = vmatpush1.msra.mxu0 0.0
          %1086 = vmatprep.subr.mxu0 0.0
          %1087 = vmatpush1.msra.mxu0 0.0
          %1088 = vmatprep.subr.mxu0 0.0
          %1089 = vmatpush1.msra.mxu0 0.0
          %1090 = vmatprep.subr.mxu0 0.0
          %1091 = vmatpush1.msra.mxu0 0.0
          %1092 = vmatprep.subr.mxu0 0.0
          %1093 = vmatpush1.msra.mxu0 0.0
          %1094 = vmatprep.subr.mxu0 0.0
          %1095 = vmatpush1.msra.mxu0 0.0
          %1096 = vmatprep.subr.mxu0 0.0
          %1097 = vmatpush1.msra.mxu0 0.0
          %1098 = vmatprep.subr.mxu0 0.0
          %1099 = vmatpush1.msra.mxu0 0.0
          %1100 = vmatprep.subr.mxu0 0.0
          %1101 = vmatpush1.msra.mxu0 0.0
          %1102 = vmatprep.subr.mxu0 0.0
          %1103 = vmatpush1.msra.mxu0 0.0
          %1104 = vmatprep.subr.mxu0 0.0
          %1105 = vmatpush1.msra.mxu0 0.0
          %1106 = vmatprep.subr.mxu0 0.0
          %1107 = vmatpush1.msra.mxu0 0.0
          %1108 = vmatprep.subr.mxu0 0.0
          %1109 = vmatpush1.msra.mxu0 0.0
          %1110 = vmatprep.subr.mxu0 0.0
          %1111 = vmatpush1.msra.mxu0 0.0
          %1112 = vmatprep.subr.mxu0 0.0
          %1113 = vmatpush1.msra.mxu0 0.0
          %1114 = vmatprep.subr.mxu0 0.0
          %1115 = vmatpush1.msra.mxu0 0.0
          %1116 = vmatprep.subr.mxu0 0.0
          %1117 = vmatpush1.msra.mxu0 0.0
          %1118 = vmatprep.subr.mxu0 0.0
          %1119 = vmatpush1.msra.mxu0 0.0
          %1120 = vmatprep.subr.mxu0 0.0
          %1121 = vmatpush1.msra.mxu0 0.0
          %1122 = vmatprep.subr.mxu0 0.0
          %1123 = vmatpush1.msra.mxu0 0.0
          %1124 = vmatprep.subr.mxu0 0.0
          %1125 = vmatpush1.msra.mxu0 0.0
          %1126 = vmatprep.subr.mxu0 0.0
          %1127 = vmatpush1.msra.mxu0 0.0
          %1128 = vmatprep.subr.mxu0 0.0
          %1129 = vmatpush1.msra.mxu0 0.0
          %1130 = vmatprep.subr.mxu0 0.0
          %1131 = vmatpush1.msra.mxu0 0.0
          %1132 = vmatprep.subr.mxu0 0.0
          %1133 = vmatpush1.msra.mxu0 0.0
          %1134 = vmatprep.subr.mxu0 0.0
          %1135 = vmatpush1.msra.mxu0 0.0
          %1136 = vmatprep.subr.mxu0 0.0
          %1137 = vmatpush1.msra.mxu0 0.0
          %1138 = vmatprep.subr.mxu0 0.0
          %1139 = vmatpush1.msra.mxu0 0.0
          %1140 = vmatprep.mubr.f32.mxu0 0.0
          %1141 = vmatmul.mubr.f32.gmra.mrb[0].mxu0 %v1074
          %v1142 = vpop.f32.mrb[0].mxu0
          %v1143 = vadd.f32 0.0, %v1142
          %v1144 = vpop.f32.mrb[0].mxu0
          %1145 = vdwg.mxu0
          %1147 = vrot.lane.b32.xlu0 %v1143, 16
          %v1148 = vpop.permute.xlu0 %1147
          %v1150 = vadd.f32 %v1069, %v1148
          %vm1151 = vcmask 195712
          %1152 = vst.msk [vmem:[#allocation5] sm:$0xff] %vm1151, %v1150
          %1153 = vst.msk [vmem:[#allocation3] sm:$0xff] %vm1061, %v1043
          %v1154 = vld [vmem:[#allocation2] sm:$0xff]
          %1156 = vrot.lane.b32.xlu0 %v1154, 104
          %v1157 = vpop.permute.xlu0 %1156
          %1158 = vrot.lane.b32.xlu0 %v558, 104
          %v1159 = vpop.permute.xlu0 %1158
          %v1160 = vsel %vm571, %v1157, 0
          %v1162 = vsel %vm571, %v1159, 0
          %1164 = vmatprep.subr.mxu0 0.0
          %1165 = vmatpush1.xpose.msra.mxu0 %v1162
          %1166 = vmatprep.subr.mxu0 0.0
          %1167 = vmatpush1.xpose.msra.mxu0 0.0
          %1168 = vmatprep.subr.mxu0 0.0
          %1169 = vmatpush1.xpose.msra.mxu0 0.0
          %1170 = vmatprep.subr.mxu0 0.0
          %1171 = vmatpush1.xpose.msra.mxu0 0.0
          %1172 = vmatprep.subr.mxu0 0.0
          %1173 = vmatpush1.xpose.msra.mxu0 0.0
          %1174 = vmatprep.subr.mxu0 0.0
          %1175 = vmatpush1.xpose.msra.mxu0 0.0
          %1176 = vmatprep.subr.mxu0 0.0
          %1177 = vmatpush1.xpose.msra.mxu0 0.0
          %1178 = vmatprep.subr.mxu0 0.0
          %1179 = vmatpush1.xpose.msra.mxu0 0.0
          %1180 = vmatprep.subr.mxu0 0.0
          %1181 = vmatpush1.xpose.msra.mxu0 0.0
          %1182 = vmatprep.subr.mxu0 0.0
          %1183 = vmatpush1.xpose.msra.mxu0 0.0
          %1184 = vmatprep.subr.mxu0 0.0
          %1185 = vmatpush1.xpose.msra.mxu0 0.0
          %1186 = vmatprep.subr.mxu0 0.0
          %1187 = vmatpush1.xpose.msra.mxu0 0.0
          %1188 = vmatprep.subr.mxu0 0.0
          %1189 = vmatpush1.xpose.msra.mxu0 0.0
          %1190 = vmatprep.subr.mxu0 0.0
          %1191 = vmatpush1.xpose.msra.mxu0 0.0
          %1192 = vmatprep.subr.mxu0 0.0
          %1193 = vmatpush1.xpose.msra.mxu0 0.0
          %1194 = vmatprep.subr.mxu0 0.0
          %1195 = vmatpush1.xpose.msra.mxu0 0.0
          %1196 = vmatprep.subr.mxu0 0.0
          %1197 = vmatpush1.xpose.msra.mxu0 0.0
          %1198 = vmatprep.subr.mxu0 0.0
          %1199 = vmatpush1.xpose.msra.mxu0 0.0
          %1200 = vmatprep.subr.mxu0 0.0
          %1201 = vmatpush1.xpose.msra.mxu0 0.0
          %1202 = vmatprep.subr.mxu0 0.0
          %1203 = vmatpush1.xpose.msra.mxu0 0.0
          %1204 = vmatprep.subr.mxu0 0.0
          %1205 = vmatpush1.xpose.msra.mxu0 0.0
          %1206 = vmatprep.subr.mxu0 0.0
          %1207 = vmatpush1.xpose.msra.mxu0 0.0
          %1208 = vmatprep.subr.mxu0 0.0
          %1209 = vmatpush1.xpose.msra.mxu0 0.0
          %1210 = vmatprep.subr.mxu0 0.0
          %1211 = vmatpush1.xpose.msra.mxu0 0.0
          %1212 = vmatprep.subr.mxu0 0.0
          %1213 = vmatpush1.xpose.msra.mxu0 0.0
          %1214 = vmatprep.subr.mxu0 0.0
          %1215 = vmatpush1.xpose.msra.mxu0 0.0
          %1216 = vmatprep.subr.mxu0 0.0
          %1217 = vmatpush1.xpose.msra.mxu0 0.0
          %1218 = vmatprep.subr.mxu0 0.0
          %1219 = vmatpush1.xpose.msra.mxu0 0.0
          %1220 = vmatprep.subr.mxu0 0.0
          %1221 = vmatpush1.xpose.msra.mxu0 0.0
          %1222 = vmatprep.subr.mxu0 0.0
          %1223 = vmatpush1.xpose.msra.mxu0 0.0
          %1224 = vmatprep.subr.mxu0 0.0
          %1225 = vmatpush1.xpose.msra.mxu0 0.0
          %1226 = vmatprep.subr.mxu0 0.0
          %1227 = vmatpush1.xpose.msra.mxu0 0.0
          %1228 = vmatprep.mubr.f32.mxu0 0.0
          %1229 = vmatmul.mubr.f32.gmra.mrb[0].mxu0 %v1160
          %v1230 = vpop.f32.mrb[0].mxu0
          %v1231 = vadd.f32 0.0, %v1230
          %v1232 = vpop.f32.mrb[0].mxu0
          %1233 = vdwg.mxu0
          %v1234 = vmul.f32 %v1231, 0.35355338
          %v1235 = vsel %vm569, %v1234, -1e+30
          %v1236 = vld [vmem:[#allocation3] sm:$0xff]
          %v1237 = vsel %vm571, %v1235, -inf
          %1238 = vmax.xlane.f32.xlu0 %v1237
          %v1239 = vpop.xlane.xlu0 %1238
          %v1240 = vmax.f32 %v1236, %v1239
          %v1241 = vsub.f32 %v1236, %v1240
          %v1242 = vmul.f32 %v1241, 1.442695
          %v1243 = vpow.pop %v1242
          %1245 = vset.pattern.permute.xlu0 3
          %1246 = vperm.xlu0 %1245, %v1240
          %v1247 = vpop.permute.xlu0 %1246
          %v1249 = vsub.f32 %v1235, %v1247
          %v1250 = vmul.f32 %v1249, 1.442695
          %v1251 = vpow.pop %v1250
          %v1252 = vld [vmem:[#allocation4] sm:$0xff]
          %v1253 = vmul.f32 %v1243, %v1252
          %v1254 = vsel %vm571, %v1251, 0.0
          %1255 = vadd.xlane.f32.xlu0 %v1254
          %v1256 = vpop.xlane.xlu0 %1255
          %v1257 = vadd.f32 %v1253, %v1256
          %vm1258 = vcmask 31768
          %1259 = vst.msk [vmem:[#allocation4] sm:$0xff] %vm1258, %v1257
          %v1260 = vld [vmem:[#allocation5] sm:$0xff]
          %1262 = vset.pattern.permute.xlu0 3
          %1263 = vperm.xlu0 %1262, %v1243
          %v1264 = vpop.permute.xlu0 %1263
          %v1266 = vmul.f32 %v1264, %v1260
          %1267 = vrot.lane.b32.xlu0 %v558, 72
          %v1268 = vpop.permute.xlu0 %1267
          %v1271 = vsel %vm571, %v1251, 0
          %1273 = vmatprep.subr.mxu0 0.0
          %1274 = vmatpush1.msra.mxu0 %v1268
          %1275 = vmatprep.subr.mxu0 0.0
          %1276 = vmatpush1.msra.mxu0 0.0
          %1277 = vmatprep.subr.mxu0 0.0
          %1278 = vmatpush1.msra.mxu0 0.0
          %1279 = vmatprep.subr.mxu0 0.0
          %1280 = vmatpush1.msra.mxu0 0.0
          %1281 = vmatprep.subr.mxu0 0.0
          %1282 = vmatpush1.msra.mxu0 0.0
          %1283 = vmatprep.subr.mxu0 0.0
          %1284 = vmatpush1.msra.mxu0 0.0
          %1285 = vmatprep.subr.mxu0 0.0
          %1286 = vmatpush1.msra.mxu0 0.0
          %1287 = vmatprep.subr.mxu0 0.0
          %1288 = vmatpush1.msra.mxu0 0.0
          %1289 = vmatprep.subr.mxu0 0.0
          %1290 = vmatpush1.msra.mxu0 0.0
          %1291 = vmatprep.subr.mxu0 0.0
          %1292 = vmatpush1.msra.mxu0 0.0
          %1293 = vmatprep.subr.mxu0 0.0
          %1294 = vmatpush1.msra.mxu0 0.0
          %1295 = vmatprep.subr.mxu0 0.0
          %1296 = vmatpush1.msra.mxu0 0.0
          %1297 = vmatprep.subr.mxu0 0.0
          %1298 = vmatpush1.msra.mxu0 0.0
          %1299 = vmatprep.subr.mxu0 0.0
          %1300 = vmatpush1.msra.mxu0 0.0
          %1301 = vmatprep.subr.mxu0 0.0
          %1302 = vmatpush1.msra.mxu0 0.0
          %1303 = vmatprep.subr.mxu0 0.0
          %1304 = vmatpush1.msra.mxu0 0.0
          %1305 = vmatprep.subr.mxu0 0.0
          %1306 = vmatpush1.msra.mxu0 0.0
          %1307 = vmatprep.subr.mxu0 0.0
          %1308 = vmatpush1.msra.mxu0 0.0
          %1309 = vmatprep.subr.mxu0 0.0
          %1310 = vmatpush1.msra.mxu0 0.0
          %1311 = vmatprep.subr.mxu0 0.0
          %1312 = vmatpush1.msra.mxu0 0.0
          %1313 = vmatprep.subr.mxu0 0.0
          %1314 = vmatpush1.msra.mxu0 0.0
          %1315 = vmatprep.subr.mxu0 0.0
          %1316 = vmatpush1.msra.mxu0 0.0
          %1317 = vmatprep.subr.mxu0 0.0
          %1318 = vmatpush1.msra.mxu0 0.0
          %1319 = vmatprep.subr.mxu0 0.0
          %1320 = vmatpush1.msra.mxu0 0.0
          %1321 = vmatprep.subr.mxu0 0.0
          %1322 = vmatpush1.msra.mxu0 0.0
          %1323 = vmatprep.subr.mxu0 0.0
          %1324 = vmatpush1.msra.mxu0 0.0
          %1325 = vmatprep.subr.mxu0 0.0
          %1326 = vmatpush1.msra.mxu0 0.0
          %1327 = vmatprep.subr.mxu0 0.0
          %1328 = vmatpush1.msra.mxu0 0.0
          %1329 = vmatprep.subr.mxu0 0.0
          %1330 = vmatpush1.msra.mxu0 0.0
          %1331 = vmatprep.subr.mxu0 0.0
          %1332 = vmatpush1.msra.mxu0 0.0
          %1333 = vmatprep.subr.mxu0 0.0
          %1334 = vmatpush1.msra.mxu0 0.0
          %1335 = vmatprep.subr.mxu0 0.0
          %1336 = vmatpush1.msra.mxu0 0.0
          %1337 = vmatprep.mubr.f32.mxu0 0.0
          %1338 = vmatmul.mubr.f32.gmra.mrb[0].mxu0 %v1271
          %v1339 = vpop.f32.mrb[0].mxu0
          %v1340 = vadd.f32 0.0, %v1339
          %v1341 = vpop.f32.mrb[0].mxu0
          %1342 = vdwg.mxu0
          %1344 = vrot.lane.b32.xlu0 %v1340, 24
          %v1345 = vpop.permute.xlu0 %1344
          %v1347 = vadd.f32 %v1266, %v1345
          %vm1348 = vcmask 261312
          %1349 = vst.msk [vmem:[#allocation5] sm:$0xff] %vm1348, %v1347
          %1350 = vst.msk [vmem:[#allocation3] sm:$0xff] %vm1258, %v1240
        $region76: #{tpu_custom_call.1} parent=43 // pred_fallthru
          _
        // Predicated region
        $region77: #{tpu_custom_call.1} parent=43 // pred_check
          %p1351 = pneg %p387
        $region78: #{tpu_custom_call.1} parent=43 // pred_check_branch
          %1353 = sbr.rel (%p1351) target = $region80
        $region79: #{tpu_custom_call.1} parent=43 // pred_region
          %v1354 = vld [vmem:[#allocation4] sm:$0xff]
          %v1355 = vrcp.pop %v1354
          %v1356 = vld [vmem:[#allocation5] sm:$0xff]
          %1358 = vset.pattern.permute.xlu0 0
          %1359 = vperm.xlu0 %1358, %v1355
          %v1360 = vpop.permute.xlu0 %1359
          %v1362 = vmul.f32 %v1356, %v1360
          %vm1363 = vcmask 64512
          %1364 = vst.msk [vmem:[#allocation5] sm:$0xff] %vm1363, %v1362
          %v1365 = vld [vmem:[#allocation5] sm:$0xff]
          %1366 = vset.pattern.permute.xlu0 1
          %1367 = vperm.xlu0 %1366, %v1355
          %v1368 = vpop.permute.xlu0 %1367
          %v1370 = vmul.f32 %v1365, %v1368
          %vm1371 = vcmask 130112
          %1372 = vst.msk [vmem:[#allocation5] sm:$0xff] %vm1371, %v1370
          %v1373 = vld [vmem:[#allocation5] sm:$0xff]
          %1374 = vset.pattern.permute.xlu0 2
          %1375 = vperm.xlu0 %1374, %v1355
          %v1376 = vpop.permute.xlu0 %1375
          %v1378 = vmul.f32 %v1373, %v1376
          %vm1379 = vcmask 195712
          %1380 = vst.msk [vmem:[#allocation5] sm:$0xff] %vm1379, %v1378
          %v1381 = vld [vmem:[#allocation5] sm:$0xff]
          %1382 = vset.pattern.permute.xlu0 3
          %1383 = vperm.xlu0 %1382, %v1355
          %v1384 = vpop.permute.xlu0 %1383
          %v1386 = vmul.f32 %v1381, %v1384
          %vm1387 = vcmask 261312
          %1388 = vst.msk [vmem:[#allocation5] sm:$0xff] %vm1387, %v1386
          %v1389 = vld [vmem:[#allocation5] sm:$0xff]
          %v1390 = vld [vmem:[#allocation14] sm:$0xff]
          %v1391 = vld [vmem:[#allocation14 + $0x8] sm:$0xff]
          %v1392 = vld [vmem:[#allocation14 + $0x10] sm:$0xff]
          %v1393 = vld [vmem:[#allocation14 + $0x18] sm:$0xff]
          %v1394 = vld [vmem:[#allocation15] sm:$0x1]
          %v1396 = vlaneseq
          %v1397 = vshrl.u32 %v1396, 7
          %v1398 = vsub.s32 0, %v1397
          %v1399 = vrot.slane %v1394, %v1398
          %vm1401 = vcmask 261120
          %v1403 = vsel %vm1401, %v1389, 0
          %1405 = vmatprep.subr.mxu0 0.0
          %1406 = vmatpush1.msra.mxu0 %v1390
          %1407 = vmatprep.subr.mxu0 0.0
          %1408 = vmatpush1.msra.mxu0 %v1391
          %1409 = vmatprep.subr.mxu0 0.0
          %1410 = vmatpush1.msra.mxu0 %v1392
          %1411 = vmatprep.subr.mxu0 0.0
          %1412 = vmatpush1.msra.mxu0 %v1393
          %1413 = vmatprep.subr.mxu0 0.0
          %1414 = vmatpush1.msra.mxu0 0.0
          %1415 = vmatprep.subr.mxu0 0.0
          %1416 = vmatpush1.msra.mxu0 0.0
          %1417 = vmatprep.subr.mxu0 0.0
          %1418 = vmatpush1.msra.mxu0 0.0
          %1419 = vmatprep.subr.mxu0 0.0
          %1420 = vmatpush1.msra.mxu0 0.0
          %1421 = vmatprep.subr.mxu0 0.0
          %1422 = vmatpush1.msra.mxu0 0.0
          %1423 = vmatprep.subr.mxu0 0.0
          %1424 = vmatpush1.msra.mxu0 0.0
          %1425 = vmatprep.subr.mxu0 0.0
          %1426 = vmatpush1.msra.mxu0 0.0
          %1427 = vmatprep.subr.mxu0 0.0
          %1428 = vmatpush1.msra.mxu0 0.0
          %1429 = vmatprep.subr.mxu0 0.0
          %1430 = vmatpush1.msra.mxu0 0.0
          %1431 = vmatprep.subr.mxu0 0.0
          %1432 = vmatpush1.msra.mxu0 0.0
          %1433 = vmatprep.subr.mxu0 0.0
          %1434 = vmatpush1.msra.mxu0 0.0
          %1435 = vmatprep.subr.mxu0 0.0
          %1436 = vmatpush1.msra.mxu0 0.0
          %1437 = vmatprep.subr.mxu0 0.0
          %1438 = vmatpush1.msra.mxu0 0.0
          %1439 = vmatprep.subr.mxu0 0.0
          %1440 = vmatpush1.msra.mxu0 0.0
          %1441 = vmatprep.subr.mxu0 0.0
          %1442 = vmatpush1.msra.mxu0 0.0
          %1443 = vmatprep.subr.mxu0 0.0
          %1444 = vmatpush1.msra.mxu0 0.0
          %1445 = vmatprep.subr.mxu0 0.0
          %1446 = vmatpush1.msra.mxu0 0.0
          %1447 = vmatprep.subr.mxu0 0.0
          %1448 = vmatpush1.msra.mxu0 0.0
          %1449 = vmatprep.subr.mxu0 0.0
          %1450 = vmatpush1.msra.mxu0 0.0
          %1451 = vmatprep.subr.mxu0 0.0
          %1452 = vmatpush1.msra.mxu0 0.0
          %1453 = vmatprep.subr.mxu0 0.0
          %1454 = vmatpush1.msra.mxu0 0.0
          %1455 = vmatprep.subr.mxu0 0.0
          %1456 = vmatpush1.msra.mxu0 0.0
          %1457 = vmatprep.subr.mxu0 0.0
          %1458 = vmatpush1.msra.mxu0 0.0
          %1459 = vmatprep.subr.mxu0 0.0
          %1460 = vmatpush1.msra.mxu0 0.0
          %1461 = vmatprep.subr.mxu0 0.0
          %1462 = vmatpush1.msra.mxu0 0.0
          %1463 = vmatprep.subr.mxu0 0.0
          %1464 = vmatpush1.msra.mxu0 0.0
          %1465 = vmatprep.subr.mxu0 0.0
          %1466 = vmatpush1.msra.mxu0 0.0
          %1467 = vmatprep.subr.mxu0 0.0
          %1468 = vmatpush1.msra.mxu0 0.0
          %1469 = vmatprep.mubr.f32.mxu0 0.0
          %1470 = vmatmul.mubr.f32.gmra.mrb[0].mxu0 %v1403
          %v1471 = vpop.f32.mrb[0].mxu0
          %v1472 = vadd.f32 %v1399, %v1471
          %v1473 = vpop.f32.mrb[0].mxu0
          %1474 = vdwg.mxu0
          %1475 = vst.msk [vmem:[%s386] sm:$0xff] %vm1401, %v1472
        $region80: #{tpu_custom_call.1} parent=43 // pred_fallthru
          _
        %s1476 = sand.u32 %s197, 1
        %s1477 = scalar_lea.sflag [#allocation8], %s1476
        %s1478 = sand.u32 %s197, 1
        %s1479 = smul.addr %s1478, 8
        %s1480 = scalar_lea.vmem [#allocation17], %s1479
        // Predicated region
        $region81: #{tpu_custom_call.1} parent=43 // pred_check
          %p1481 = pneg %p207
        $region82: #{tpu_custom_call.1} parent=43 // pred_check_branch
          %1483 = sbr.rel (%p1481) target = $region84
        $region83: #{tpu_custom_call.1} parent=43 // pred_region
          %s1485 = ssub.s32 128, 128
          %1486 = vsyncadd %s1477, %s1485
          %s1487 = sadd.s32 %s34, %s33
          %s1488 = smul.addr %s1487, 128
          %s1489 = scalar_lea.hbm %s6, %s1488
          %s1491 = sshll.u32 %s1480, 4
          %s1492 = int_to_ptr.vmem [resolvable:$true] %s1491
          %1494 = dma.vmem_to_hbm [thread:$0]  %s1492, 128, %s1489, %s1477
        $region84: #{tpu_custom_call.1} parent=43 // pred_fallthru
          _
      $region44: #{tpu_custom_call.1} parent=5 // pred_fallthru
        _
      %p1495 = scmp.le.s32.totalorder 2, %s23
      // Predicated region
      $region85: #{tpu_custom_call.1} parent=5 // pred_check
        %p1496 = pneg %p1495
      $region86: #{tpu_custom_call.1} parent=5 // pred_check_branch
        %1498 = sbr.rel (%p1496) target = $region88
      $region87: #{tpu_custom_call.1} parent=5 // pred_region
        %s1499 = ssub.s32 %s23, 2
        // Predicated region
        $region89: #{tpu_custom_call.1} parent=87 // pred_check
          %p1500 = pneg %p213
        $region90: #{tpu_custom_call.1} parent=87 // pred_check_branch
          %1502 = sbr.rel (%p1500) target = $region92
        $region91: #{tpu_custom_call.1} parent=87 // pred_region
          %s1503 = sand.u32 %s198, 1
          %s1504 = scalar_lea.sflag [#allocation8], %s1503
          %s1505 = sand.u32 %s198, 1
          %s1506 = smul.addr %s1505, 8
          %s1507 = scalar_lea.vmem [#allocation17], %s1506
          %1508 = dma.done %s1504, 128
        $region92: #{tpu_custom_call.1} parent=87 // pred_fallthru
          _
      $region88: #{tpu_custom_call.1} parent=5 // pred_fallthru
        _
    $region6: #{tpu_custom_call.1} parent=1 // loop_footer
      %s27 = sadd.s32 1, %s23
    $region7: #{tpu_custom_call.1} parent=1 // loop_footer_branch
      %22 = sbr.rel target = $region3
    $region8: #{tpu_custom_call.1} parent=1 // loop_exit
      _
    %1509 = vsyncpa [#allocation7], 1
    %s1510 = scalar_lea.sflag [#allocation7], 1
    %1511 = vsyncpa %s1510, 1
    %1512 = vsyncpa [#allocation10], 1
    %s1513 = scalar_lea.sflag [#allocation10], 1
    %1514 = vsyncpa %s1513, 1
    %1515 = vsyncpa [#allocation13], 1
    %1516 = vsyncpa [#allocation16], 1
    %1517 = vsyncpa [#allocation8], 1
    %s1518 = scalar_lea.sflag [#allocation8], 1
    %1519 = vsyncpa %s1518, 1

</llo_original>
